<compile_context>
chip_gen: v7x
topology: tpu7x:2x2x1
jax: 0.10.0
libtpu: 0.0.40
codegen_flags: <defaults>
</compile_context>

<pallas_src>
import jax
import jax.numpy as jnp
from jax import lax
from jax.experimental import pallas as pl
from jax.experimental.pallas import tpu as pltpu

HIDDEN = 64
INPUT = 4      # len(states)
OUTPUT = 1


def _lstm_fc_kernel(x_ref,      # (T*Bp, I)   time-major input, batch padded to Bp
                    wih0_ref,   # (I, 4H)     layer-0 input weights, cols [f,i,o,g], sigmoid cols pre-scaled 0.5
                    b0_ref,     # (1, 4H)     b_ih0 + b_hh0, same layout/scaling
                    wcomb_ref,  # (2H, 8H)    [ [W_hh0^T;0]  |  [W_ih1^T;W_hh1^T] ], pre-scaled
                    b1_ref,     # (1, 4H)     b_ih1 + b_hh1, cols [i,f,g,o], pre-scaled
                    wfc_ref,    # (1, 2H)     [0 | fc.weight]
                    bfc_ref,    # (1, 1)
                    out_ref):   # (Bp, 1)
    Bp = out_ref.shape[0]
    T = x_ref.shape[0] // Bp
    H2 = wcomb_ref.shape[0]          # 2*H = packed lane width (128)
    H = H2 // 2
    H4 = 4 * H

    # ---- hoisted layer-0 input projection: one matmul for all timesteps ----
    xw0 = jnp.dot(x_ref[...], wih0_ref[...],
                  preferred_element_type=jnp.float32) + b0_ref[...]

    wcomb = wcomb_ref[...]
    b1 = b1_ref[...]

    # ---- hoisted per-lane constants (JAX does not CSE broadcast_in_dim) ----
    lane = lax.broadcasted_iota(jnp.int32, (Bp, H2), 1)
    low = lane < H                                   # lanes [0, H)
    col4 = lax.broadcasted_iota(jnp.int32, (Bp, H4), 1)
    # single-tanh gates: sigmoid(x) = 0.5*tanh(0.5*x) + 0.5; the 0.5 input
    # scale is already folded into the weights, only the output affine remains.
    tanh0 = col4 >= 3 * H                            # layer-0 cols [f,i,o,g]: g is tanh
    so0 = jnp.where(tanh0, 1.0, 0.5).astype(jnp.float32)
    sh0 = jnp.where(tanh0, 0.0, 0.5).astype(jnp.float32)
    tanh1 = (col4 >= 2 * H) & (col4 < 3 * H)         # layer-1 cols [i,f,g,o]: g is tanh
    so1 = jnp.where(tanh1, 1.0, 0.5).astype(jnp.float32)
    sh1 = jnp.where(tanh1, 0.0, 0.5).astype(jnp.float32)

    # packed lane-dense state, one vreg each:
    #   hd1 = [h1 | junk],  cd1 = [c1 | c1]
    #   hd2 = [junk | h2],  cd2 = [c2 | c2]
    zeros2 = jnp.zeros((Bp, H2), jnp.float32)
    hd2 = cd1 = cd2 = zeros2
    z0rec = jnp.zeros((Bp, H4), jnp.float32)         # h1(-1) == 0  =>  recurrent term 0

    for t in range(T):                               # static T -> fully unrolled
        # -------- layer 0 (gate columns [f, i, o, g]) --------
        z0 = xw0[t * Bp:(t + 1) * Bp, :] + z0rec
        g0 = jnp.tanh(z0) * so0 + sh0                # one EUP block for all 4 gates
        sig0 = g0[:, :H2]                            # [f | i]
        act0 = g0[:, H2:]                            # [o | g]
        p0 = sig0 * jnp.where(low, cd1, act0)        # [f*c1 | i*g]
        cd1 = p0 + pltpu.roll(p0, H, axis=1)         # [c1' | c1']
        hd1 = act0 * jnp.tanh(cd1)                   # [h1' | junk]

        # -------- single fused per-step matmul: [h1'|h2] @ [whh0 | w1] --------
        # (whh0 rows for the h2 lanes are zero, so xcat @ whh0 == h1' @ whh0)
        xcat = jnp.where(low, hd1, hd2)              # [h1' | h2]
        zcomb = jnp.dot(xcat, wcomb, preferred_element_type=jnp.float32)
        z0rec = zcomb[:, :H4]                        # layer-0 recurrent term for t+1
        z1 = zcomb[:, H4:] + b1                      # layer-1 gates for step t

        # -------- layer 1 (gate columns [i, f, g, o]) --------
        g1 = jnp.tanh(z1) * so1 + sh1
        sig1 = g1[:, :H2]                            # [i | f]
        act1 = g1[:, H2:]                            # [g | o]
        p1 = sig1 * jnp.where(low, act1, cd2)        # [i*g | f*c2]
        cd2 = p1 + pltpu.roll(p1, H, axis=1)         # [c2' | c2']
        hd2 = act1 * jnp.tanh(cd2)                   # [junk | h2']

    # ---- fc(h2_last): VPU multiply + lane reduce (skip a final MXU pass) ----
    out_ref[...] = (jnp.sum(hd2 * wfc_ref[...], axis=-1, keepdims=True)
                    + bfc_ref[...])


def _perm_fiog(w):
    """Permute the 4H gate columns from PyTorch (i,f,g,o) to kernel (f,i,o,g)."""
    i, f, g, o = jnp.split(w, 4, axis=-1)
    return jnp.concatenate([f, i, o, g], axis=-1)


def _halve_sigmoid_cols(w, order):
    """Fold the 0.5 input scale of sigmoid(x)=0.5*tanh(0.5x)+0.5 into weights."""
    blocks = jnp.split(w, 4, axis=-1)
    return jnp.concatenate(
        [b if name == "g" else b * 0.5 for b, name in zip(blocks, order)], axis=-1)


def prepare_params(params):
    """One-time repack of natural-layout params into the fused kernel layout."""
    wih0, whh0, b0, wih1, whh1, b1, wfc, bfc = params
    H = whh0.shape[0]
    f32 = jnp.float32
    # layer 0 -> gate cols [f,i,o,g], sigmoid cols pre-scaled by 0.5
    wih0_k = _halve_sigmoid_cols(_perm_fiog(wih0), "fiog").astype(f32)     # (I, 4H)
    b0_k = _halve_sigmoid_cols(_perm_fiog(b0), "fiog").astype(f32)         # (1, 4H)
    whh0_k = jnp.concatenate(                                              # (2H, 4H)
        [_halve_sigmoid_cols(_perm_fiog(whh0), "fiog").astype(f32),
         jnp.zeros((H, 4 * H), f32)], axis=0)    # zero rows keep xcat@whh0 == h1@whh0
    # layer 1 -> natural gate cols [i,f,g,o], sigmoid cols pre-scaled by 0.5
    w1_k = _halve_sigmoid_cols(
        jnp.concatenate([wih1, whh1], axis=0), "ifgo").astype(f32)         # (2H, 4H)
    b1_k = _halve_sigmoid_cols(b1, "ifgo").astype(f32)                     # (1, 4H)
    # fused per-step RHS
    wcomb = jnp.concatenate([whh0_k, w1_k], axis=1)                        # (2H, 8H)
    wfc_k = jnp.concatenate([jnp.zeros((1, H), f32), wfc.T.astype(f32)], axis=1)
    return (wih0_k, b0_k, wcomb, b1_k, wfc_k, bfc.astype(f32))


@jax.jit
def rnn_model_forward(x, kparams):
    """x: (B, T, I) batch_first (PyTorch convention). kparams from prepare_params.
    Returns (B, 1) — fc applied to the last timestep's top-layer hidden state."""
    B, T, I = x.shape
    Bp = ((B + 7) // 8) * 8                      # pad batch to an 8-sublane multiple
    x_tm = jnp.transpose(x, (1, 0, 2)).astype(jnp.float32)    # (T, B, I)
    if Bp != B:
        x_tm = jnp.pad(x_tm, ((0, 0), (0, Bp - B), (0, 0)))
    x2d = x_tm.reshape(T * Bp, I)

    full = lambda a: pl.BlockSpec(a.shape, lambda: (0,) * a.ndim)

    # TODO(synk): for large batches, add a leading "parallel" batch-tile grid
    # axis (streaming x per tile, h/c in scratch) so v7x's second TensorCore is
    # used and per-core VMEM stays bounded; at B=2 (padded to 8) grid=() is optimal.
    out = pl.pallas_call(
        _lstm_fc_kernel,
        out_shape=jax.ShapeDtypeStruct((Bp, OUTPUT), jnp.float32),
        grid=(),
        in_specs=[full(x2d)] + [full(a) for a in kparams],
        out_specs=pl.BlockSpec((Bp, OUTPUT), lambda: (0, 0)),
    )(x2d, *kparams)
    return out[:B]


def init_params(key, input_size=INPUT, hidden_size=HIDDEN, output_size=OUTPUT):
    """Deterministic init mirroring PyTorch shapes (weights stored transposed,
    natural (i,f,g,o) gate order; biases pre-combined b_ih + b_hh)."""
    H = hidden_size
    bound = 1.0 / jnp.sqrt(jnp.float32(H))
    ks = jax.random.split(key, 11)
    u = lambda k, shp: jax.random.uniform(k, shp, jnp.float32, -bound, bound)

    # layer 0: W_ih (4H, I) -> (I, 4H); W_hh (4H, H) -> (H, 4H)
    wih0 = u(ks[0], (input_size, 4 * H))
    whh0 = u(ks[1], (H, 4 * H))
    b0 = (u(ks[2], (4 * H,)) + u(ks[3], (4 * H,))).reshape(1, 4 * H)
    # layer 1: W_ih (4H, H) -> (H, 4H); W_hh (4H, H) -> (H, 4H)
    wih1 = u(ks[4], (H, 4 * H))
    whh1 = u(ks[5], (H, 4 * H))
    b1 = (u(ks[6], (4 * H,)) + u(ks[7], (4 * H,))).reshape(1, 4 * H)
    # fc: weight (O, H) -> (H, O); bias (O,)
    wfc = u(ks[8], (H, output_size))
    bfc = u(ks[9], (output_size,)).reshape(1, output_size)
    return (wih0, whh0, b0, wih1, whh1, b1, wfc, bfc)


def _reference_forward(x, params):
    """Pure-JAX reference of the PyTorch forward for correctness checking."""
    (wih0, whh0, b0, wih1, whh1, b1, wfc, bfc) = params
    B, T, _ = x.shape
    H = HIDDEN

    def cell(x_t, h, c, wih, whh, b):
        g = x_t @ wih + h @ whh + b
        i = jax.nn.sigmoid(g[:, :H])
        f = jax.nn.sigmoid(g[:, H:2 * H])
        gg = jnp.tanh(g[:, 2 * H:3 * H])
        o = jax.nn.sigmoid(g[:, 3 * H:])
        c = f * c + i * gg
        return o * jnp.tanh(c), c

    h1 = c1 = h2 = c2 = jnp.zeros((B, H), jnp.float32)
    for t in range(T):
        h1, c1 = cell(x[:, t, :], h1, c1, wih0, whh0, b0)
        h2, c2 = cell(h1, h2, c2, wih1, whh1, b1)
    return h2 @ wfc + bfc


if __name__ == "__main__":
    key = jax.random.PRNGKey(0)
    k_x, k_p = jax.random.split(key)

    B, T = 2, 8
    x = jax.random.normal(k_x, (B, T, INPUT), jnp.float32)   # (batch, seq, input)
    params = init_params(k_p)
    kparams = prepare_params(params)      # one-time repack, hoisted off the call path

    out = rnn_model_forward(x, kparams)
    out = jax.block_until_ready(out)

    ref = _reference_forward(x, params)
    assert out.shape == (B, OUTPUT)
    assert jnp.allclose(out, ref, atol=1e-4, rtol=1e-4), (out, ref)

    print("KERNEL_OK")
</pallas_src>

<mosaic_0001>
module attributes {stable_mosaic.version = 11 : i64} {
  func.func @_lstm_fc_kernel(%arg0: memref<64x4xf32, #tpu.memory_space<vmem>>, %arg1: memref<4x256xf32, #tpu.memory_space<vmem>>, %arg2: memref<1x256xf32, #tpu.memory_space<vmem>>, %arg3: memref<128x512xf32, #tpu.memory_space<vmem>>, %arg4: memref<1x256xf32, #tpu.memory_space<vmem>>, %arg5: memref<1x128xf32, #tpu.memory_space<vmem>>, %arg6: memref<1x1xf32, #tpu.memory_space<vmem>>, %arg7: memref<8x1xf32, #tpu.memory_space<vmem>>) attributes {dimension_semantics = [], scalar_prefetch = 0 : i64, scratch_operands = 0 : i64, tpu.core_type = #tpu.core_type<tc>} {
    %c0 = arith.constant 0 : index
    %c0_0 = arith.constant 0 : index
    %0 = vector.load %arg0[%c0, %c0_0] : memref<64x4xf32, #tpu.memory_space<vmem>>, vector<64x4xf32>
    %c0_1 = arith.constant 0 : index
    %c0_2 = arith.constant 0 : index
    %1 = vector.load %arg1[%c0_1, %c0_2] : memref<4x256xf32, #tpu.memory_space<vmem>>, vector<4x256xf32>
    %cst = arith.constant dense<0.000000e+00> : vector<64x256xf32>
    %2 = tpu.matmul %0, %1, %cst {dimension_numbers = #tpu.dot_dimension_numbers<[1], [0], [0], [1], [0, 0, 1, 1], [], []>} : vector<64x4xf32>, vector<4x256xf32>, vector<64x256xf32> -> vector<64x256xf32>
    %c0_3 = arith.constant 0 : index
    %c0_4 = arith.constant 0 : index
    %3 = vector.load %arg2[%c0_3, %c0_4] : memref<1x256xf32, #tpu.memory_space<vmem>>, vector<1x256xf32>
    %4 = vector.broadcast %3 : vector<1x256xf32> to vector<64x256xf32>
    %5 = arith.addf %2, %4 : vector<64x256xf32>
    %c0_5 = arith.constant 0 : index
    %c0_6 = arith.constant 0 : index
    %6 = vector.load %arg3[%c0_5, %c0_6] : memref<128x512xf32, #tpu.memory_space<vmem>>, vector<128x512xf32>
    %c0_7 = arith.constant 0 : index
    %c0_8 = arith.constant 0 : index
    %7 = vector.load %arg4[%c0_7, %c0_8] : memref<1x256xf32, #tpu.memory_space<vmem>>, vector<1x256xf32>
    %8 = tpu.iota {dimensions = array<i32: 1>} : vector<8x128xi32>
    %c64_i32 = arith.constant 64 : i32
    %9 = vector.broadcast %c64_i32 : i32 to vector<8x128xi32>
    %10 = arith.cmpi slt, %8, %9 : vector<8x128xi32>
    %11 = tpu.iota {dimensions = array<i32: 1>} : vector<8x256xi32>
    %c192_i32 = arith.constant 192 : i32
    %12 = vector.broadcast %c192_i32 : i32 to vector<8x256xi32>
    %13 = arith.cmpi sge, %11, %12 : vector<8x256xi32>
    %cst_9 = arith.constant 1.000000e+00 : f32
    %cst_10 = arith.constant 5.000000e-01 : f32
    %14 = vector.broadcast %cst_9 : f32 to vector<8x256xf32>
    %15 = vector.broadcast %cst_10 : f32 to vector<8x256xf32>
    %16 = arith.select %13, %14, %15 : vector<8x256xi1>, vector<8x256xf32>
    %cst_11 = arith.constant 0.000000e+00 : f32
    %cst_12 = arith.constant 5.000000e-01 : f32
    %17 = vector.broadcast %cst_11 : f32 to vector<8x256xf32>
    %18 = vector.broadcast %cst_12 : f32 to vector<8x256xf32>
    %19 = arith.select %13, %17, %18 : vector<8x256xi1>, vector<8x256xf32>
    %c128_i32 = arith.constant 128 : i32
    %20 = vector.broadcast %c128_i32 : i32 to vector<8x256xi32>
    %21 = arith.cmpi sge, %11, %20 : vector<8x256xi32>
    %c192_i32_13 = arith.constant 192 : i32
    %22 = vector.broadcast %c192_i32_13 : i32 to vector<8x256xi32>
    %23 = arith.cmpi slt, %11, %22 : vector<8x256xi32>
    %24 = arith.andi %21, %23 : vector<8x256xi1>
    %cst_14 = arith.constant 1.000000e+00 : f32
    %cst_15 = arith.constant 5.000000e-01 : f32
    %25 = vector.broadcast %cst_14 : f32 to vector<8x256xf32>
    %26 = vector.broadcast %cst_15 : f32 to vector<8x256xf32>
    %27 = arith.select %24, %25, %26 : vector<8x256xi1>, vector<8x256xf32>
    %cst_16 = arith.constant 0.000000e+00 : f32
    %cst_17 = arith.constant 5.000000e-01 : f32
    %28 = vector.broadcast %cst_16 : f32 to vector<8x256xf32>
    %29 = vector.broadcast %cst_17 : f32 to vector<8x256xf32>
    %30 = arith.select %24, %28, %29 : vector<8x256xi1>, vector<8x256xf32>
    %cst_18 = arith.constant 0.000000e+00 : f32
    %31 = vector.broadcast %cst_18 : f32 to vector<8x128xf32>
    %cst_19 = arith.constant 0.000000e+00 : f32
    %32 = vector.broadcast %cst_19 : f32 to vector<8x256xf32>
    %33 = vector.extract_strided_slice %5 {offsets = [0, 0], sizes = [8, 256], strides = [1, 1]} : vector<64x256xf32> to vector<8x256xf32>
    %34 = arith.addf %33, %32 : vector<8x256xf32>
    %35 = math.tanh %34 : vector<8x256xf32>
    %36 = arith.mulf %35, %16 : vector<8x256xf32>
    %37 = arith.addf %36, %19 : vector<8x256xf32>
    %38 = vector.extract_strided_slice %37 {offsets = [0, 0], sizes = [8, 128], strides = [1, 1]} : vector<8x256xf32> to vector<8x128xf32>
    %39 = vector.extract_strided_slice %37 {offsets = [0, 128], sizes = [8, 128], strides = [1, 1]} : vector<8x256xf32> to vector<8x128xf32>
    %40 = arith.select %10, %31, %39 : vector<8x128xi1>, vector<8x128xf32>
    %41 = arith.mulf %38, %40 : vector<8x128xf32>
    %c64_i32_20 = arith.constant 64 : i32
    %42 = tpu.dynamic_rotate %41 by %c64_i32_20 dim 1 : vector<8x128xf32>, i32 -> vector<8x128xf32>
    %43 = arith.addf %41, %42 : vector<8x128xf32>
    %44 = math.tanh %43 : vector<8x128xf32>
    %45 = arith.mulf %39, %44 : vector<8x128xf32>
    %46 = arith.select %10, %45, %31 : vector<8x128xi1>, vector<8x128xf32>
    %cst_21 = arith.constant dense<0.000000e+00> : vector<8x512xf32>
    %47 = tpu.matmul %46, %6, %cst_21 {dimension_numbers = #tpu.dot_dimension_numbers<[1], [0], [0], [1], [0, 0, 1, 1], [], []>} : vector<8x128xf32>, vector<128x512xf32>, vector<8x512xf32> -> vector<8x512xf32>
    %48 = vector.extract_strided_slice %47 {offsets = [0, 0], sizes = [8, 256], strides = [1, 1]} : vector<8x512xf32> to vector<8x256xf32>
    %49 = vector.extract_strided_slice %47 {offsets = [0, 256], sizes = [8, 256], strides = [1, 1]} : vector<8x512xf32> to vector<8x256xf32>
    %50 = vector.broadcast %7 : vector<1x256xf32> to vector<8x256xf32>
    %51 = arith.addf %49, %50 : vector<8x256xf32>
    %52 = math.tanh %51 : vector<8x256xf32>
    %53 = arith.mulf %52, %27 : vector<8x256xf32>
    %54 = arith.addf %53, %30 : vector<8x256xf32>
    %55 = vector.extract_strided_slice %54 {offsets = [0, 0], sizes = [8, 128], strides = [1, 1]} : vector<8x256xf32> to vector<8x128xf32>
    %56 = vector.extract_strided_slice %54 {offsets = [0, 128], sizes = [8, 128], strides = [1, 1]} : vector<8x256xf32> to vector<8x128xf32>
    %57 = arith.select %10, %56, %31 : vector<8x128xi1>, vector<8x128xf32>
    %58 = arith.mulf %55, %57 : vector<8x128xf32>
    %c64_i32_22 = arith.constant 64 : i32
    %59 = tpu.dynamic_rotate %58 by %c64_i32_22 dim 1 : vector<8x128xf32>, i32 -> vector<8x128xf32>
    %60 = arith.addf %58, %59 : vector<8x128xf32>
    %61 = math.tanh %60 : vector<8x128xf32>
    %62 = arith.mulf %56, %61 : vector<8x128xf32>
    %63 = vector.extract_strided_slice %5 {offsets = [8, 0], sizes = [8, 256], strides = [1, 1]} : vector<64x256xf32> to vector<8x256xf32>
    %64 = arith.addf %63, %48 : vector<8x256xf32>
    %65 = math.tanh %64 : vector<8x256xf32>
    %66 = arith.mulf %65, %16 : vector<8x256xf32>
    %67 = arith.addf %66, %19 : vector<8x256xf32>
    %68 = vector.extract_strided_slice %67 {offsets = [0, 0], sizes = [8, 128], strides = [1, 1]} : vector<8x256xf32> to vector<8x128xf32>
    %69 = vector.extract_strided_slice %67 {offsets = [0, 128], sizes = [8, 128], strides = [1, 1]} : vector<8x256xf32> to vector<8x128xf32>
    %70 = arith.select %10, %43, %69 : vector<8x128xi1>, vector<8x128xf32>
    %71 = arith.mulf %68, %70 : vector<8x128xf32>
    %c64_i32_23 = arith.constant 64 : i32
    %72 = tpu.dynamic_rotate %71 by %c64_i32_23 dim 1 : vector<8x128xf32>, i32 -> vector<8x128xf32>
    %73 = arith.addf %71, %72 : vector<8x128xf32>
    %74 = math.tanh %73 : vector<8x128xf32>
    %75 = arith.mulf %69, %74 : vector<8x128xf32>
    %76 = arith.select %10, %75, %62 : vector<8x128xi1>, vector<8x128xf32>
    %cst_24 = arith.constant dense<0.000000e+00> : vector<8x512xf32>
    %77 = tpu.matmul %76, %6, %cst_24 {dimension_numbers = #tpu.dot_dimension_numbers<[1], [0], [0], [1], [0, 0, 1, 1], [], []>} : vector<8x128xf32>, vector<128x512xf32>, vector<8x512xf32> -> vector<8x512xf32>
    %78 = vector.extract_strided_slice %77 {offsets = [0, 0], sizes = [8, 256], strides = [1, 1]} : vector<8x512xf32> to vector<8x256xf32>
    %79 = vector.extract_strided_slice %77 {offsets = [0, 256], sizes = [8, 256], strides = [1, 1]} : vector<8x512xf32> to vector<8x256xf32>
    %80 = vector.broadcast %7 : vector<1x256xf32> to vector<8x256xf32>
    %81 = arith.addf %79, %80 : vector<8x256xf32>
    %82 = math.tanh %81 : vector<8x256xf32>
    %83 = arith.mulf %82, %27 : vector<8x256xf32>
    %84 = arith.addf %83, %30 : vector<8x256xf32>
    %85 = vector.extract_strided_slice %84 {offsets = [0, 0], sizes = [8, 128], strides = [1, 1]} : vector<8x256xf32> to vector<8x128xf32>
    %86 = vector.extract_strided_slice %84 {offsets = [0, 128], sizes = [8, 128], strides = [1, 1]} : vector<8x256xf32> to vector<8x128xf32>
    %87 = arith.select %10, %86, %60 : vector<8x128xi1>, vector<8x128xf32>
    %88 = arith.mulf %85, %87 : vector<8x128xf32>
    %c64_i32_25 = arith.constant 64 : i32
    %89 = tpu.dynamic_rotate %88 by %c64_i32_25 dim 1 : vector<8x128xf32>, i32 -> vector<8x128xf32>
    %90 = arith.addf %88, %89 : vector<8x128xf32>
    %91 = math.tanh %90 : vector<8x128xf32>
    %92 = arith.mulf %86, %91 : vector<8x128xf32>
    %93 = vector.extract_strided_slice %5 {offsets = [16, 0], sizes = [8, 256], strides = [1, 1]} : vector<64x256xf32> to vector<8x256xf32>
    %94 = arith.addf %93, %78 : vector<8x256xf32>
    %95 = math.tanh %94 : vector<8x256xf32>
    %96 = arith.mulf %95, %16 : vector<8x256xf32>
    %97 = arith.addf %96, %19 : vector<8x256xf32>
    %98 = vector.extract_strided_slice %97 {offsets = [0, 0], sizes = [8, 128], strides = [1, 1]} : vector<8x256xf32> to vector<8x128xf32>
    %99 = vector.extract_strided_slice %97 {offsets = [0, 128], sizes = [8, 128], strides = [1, 1]} : vector<8x256xf32> to vector<8x128xf32>
    %100 = arith.select %10, %73, %99 : vector<8x128xi1>, vector<8x128xf32>
    %101 = arith.mulf %98, %100 : vector<8x128xf32>
    %c64_i32_26 = arith.constant 64 : i32
    %102 = tpu.dynamic_rotate %101 by %c64_i32_26 dim 1 : vector<8x128xf32>, i32 -> vector<8x128xf32>
    %103 = arith.addf %101, %102 : vector<8x128xf32>
    %104 = math.tanh %103 : vector<8x128xf32>
    %105 = arith.mulf %99, %104 : vector<8x128xf32>
    %106 = arith.select %10, %105, %92 : vector<8x128xi1>, vector<8x128xf32>
    %cst_27 = arith.constant dense<0.000000e+00> : vector<8x512xf32>
    %107 = tpu.matmul %106, %6, %cst_27 {dimension_numbers = #tpu.dot_dimension_numbers<[1], [0], [0], [1], [0, 0, 1, 1], [], []>} : vector<8x128xf32>, vector<128x512xf32>, vector<8x512xf32> -> vector<8x512xf32>
    %108 = vector.extract_strided_slice %107 {offsets = [0, 0], sizes = [8, 256], strides = [1, 1]} : vector<8x512xf32> to vector<8x256xf32>
    %109 = vector.extract_strided_slice %107 {offsets = [0, 256], sizes = [8, 256], strides = [1, 1]} : vector<8x512xf32> to vector<8x256xf32>
    %110 = vector.broadcast %7 : vector<1x256xf32> to vector<8x256xf32>
    %111 = arith.addf %109, %110 : vector<8x256xf32>
    %112 = math.tanh %111 : vector<8x256xf32>
    %113 = arith.mulf %112, %27 : vector<8x256xf32>
    %114 = arith.addf %113, %30 : vector<8x256xf32>
    %115 = vector.extract_strided_slice %114 {offsets = [0, 0], sizes = [8, 128], strides = [1, 1]} : vector<8x256xf32> to vector<8x128xf32>
    %116 = vector.extract_strided_slice %114 {offsets = [0, 128], sizes = [8, 128], strides = [1, 1]} : vector<8x256xf32> to vector<8x128xf32>
    %117 = arith.select %10, %116, %90 : vector<8x128xi1>, vector<8x128xf32>
    %118 = arith.mulf %115, %117 : vector<8x128xf32>
    %c64_i32_28 = arith.constant 64 : i32
    %119 = tpu.dynamic_rotate %118 by %c64_i32_28 dim 1 : vector<8x128xf32>, i32 -> vector<8x128xf32>
    %120 = arith.addf %118, %119 : vector<8x128xf32>
    %121 = math.tanh %120 : vector<8x128xf32>
    %122 = arith.mulf %116, %121 : vector<8x128xf32>
    %123 = vector.extract_strided_slice %5 {offsets = [24, 0], sizes = [8, 256], strides = [1, 1]} : vector<64x256xf32> to vector<8x256xf32>
    %124 = arith.addf %123, %108 : vector<8x256xf32>
    %125 = math.tanh %124 : vector<8x256xf32>
    %126 = arith.mulf %125, %16 : vector<8x256xf32>
    %127 = arith.addf %126, %19 : vector<8x256xf32>
    %128 = vector.extract_strided_slice %127 {offsets = [0, 0], sizes = [8, 128], strides = [1, 1]} : vector<8x256xf32> to vector<8x128xf32>
    %129 = vector.extract_strided_slice %127 {offsets = [0, 128], sizes = [8, 128], strides = [1, 1]} : vector<8x256xf32> to vector<8x128xf32>
    %130 = arith.select %10, %103, %129 : vector<8x128xi1>, vector<8x128xf32>
    %131 = arith.mulf %128, %130 : vector<8x128xf32>
    %c64_i32_29 = arith.constant 64 : i32
    %132 = tpu.dynamic_rotate %131 by %c64_i32_29 dim 1 : vector<8x128xf32>, i32 -> vector<8x128xf32>
    %133 = arith.addf %131, %132 : vector<8x128xf32>
    %134 = math.tanh %133 : vector<8x128xf32>
    %135 = arith.mulf %129, %134 : vector<8x128xf32>
    %136 = arith.select %10, %135, %122 : vector<8x128xi1>, vector<8x128xf32>
    %cst_30 = arith.constant dense<0.000000e+00> : vector<8x512xf32>
    %137 = tpu.matmul %136, %6, %cst_30 {dimension_numbers = #tpu.dot_dimension_numbers<[1], [0], [0], [1], [0, 0, 1, 1], [], []>} : vector<8x128xf32>, vector<128x512xf32>, vector<8x512xf32> -> vector<8x512xf32>
    %138 = vector.extract_strided_slice %137 {offsets = [0, 0], sizes = [8, 256], strides = [1, 1]} : vector<8x512xf32> to vector<8x256xf32>
    %139 = vector.extract_strided_slice %137 {offsets = [0, 256], sizes = [8, 256], strides = [1, 1]} : vector<8x512xf32> to vector<8x256xf32>
    %140 = vector.broadcast %7 : vector<1x256xf32> to vector<8x256xf32>
    %141 = arith.addf %139, %140 : vector<8x256xf32>
    %142 = math.tanh %141 : vector<8x256xf32>
    %143 = arith.mulf %142, %27 : vector<8x256xf32>
    %144 = arith.addf %143, %30 : vector<8x256xf32>
    %145 = vector.extract_strided_slice %144 {offsets = [0, 0], sizes = [8, 128], strides = [1, 1]} : vector<8x256xf32> to vector<8x128xf32>
    %146 = vector.extract_strided_slice %144 {offsets = [0, 128], sizes = [8, 128], strides = [1, 1]} : vector<8x256xf32> to vector<8x128xf32>
    %147 = arith.select %10, %146, %120 : vector<8x128xi1>, vector<8x128xf32>
    %148 = arith.mulf %145, %147 : vector<8x128xf32>
    %c64_i32_31 = arith.constant 64 : i32
    %149 = tpu.dynamic_rotate %148 by %c64_i32_31 dim 1 : vector<8x128xf32>, i32 -> vector<8x128xf32>
    %150 = arith.addf %148, %149 : vector<8x128xf32>
    %151 = math.tanh %150 : vector<8x128xf32>
    %152 = arith.mulf %146, %151 : vector<8x128xf32>
    %153 = vector.extract_strided_slice %5 {offsets = [32, 0], sizes = [8, 256], strides = [1, 1]} : vector<64x256xf32> to vector<8x256xf32>
    %154 = arith.addf %153, %138 : vector<8x256xf32>
    %155 = math.tanh %154 : vector<8x256xf32>
    %156 = arith.mulf %155, %16 : vector<8x256xf32>
    %157 = arith.addf %156, %19 : vector<8x256xf32>
    %158 = vector.extract_strided_slice %157 {offsets = [0, 0], sizes = [8, 128], strides = [1, 1]} : vector<8x256xf32> to vector<8x128xf32>
    %159 = vector.extract_strided_slice %157 {offsets = [0, 128], sizes = [8, 128], strides = [1, 1]} : vector<8x256xf32> to vector<8x128xf32>
    %160 = arith.select %10, %133, %159 : vector<8x128xi1>, vector<8x128xf32>
    %161 = arith.mulf %158, %160 : vector<8x128xf32>
    %c64_i32_32 = arith.constant 64 : i32
    %162 = tpu.dynamic_rotate %161 by %c64_i32_32 dim 1 : vector<8x128xf32>, i32 -> vector<8x128xf32>
    %163 = arith.addf %161, %162 : vector<8x128xf32>
    %164 = math.tanh %163 : vector<8x128xf32>
    %165 = arith.mulf %159, %164 : vector<8x128xf32>
    %166 = arith.select %10, %165, %152 : vector<8x128xi1>, vector<8x128xf32>
    %cst_33 = arith.constant dense<0.000000e+00> : vector<8x512xf32>
    %167 = tpu.matmul %166, %6, %cst_33 {dimension_numbers = #tpu.dot_dimension_numbers<[1], [0], [0], [1], [0, 0, 1, 1], [], []>} : vector<8x128xf32>, vector<128x512xf32>, vector<8x512xf32> -> vector<8x512xf32>
    %168 = vector.extract_strided_slice %167 {offsets = [0, 0], sizes = [8, 256], strides = [1, 1]} : vector<8x512xf32> to vector<8x256xf32>
    %169 = vector.extract_strided_slice %167 {offsets = [0, 256], sizes = [8, 256], strides = [1, 1]} : vector<8x512xf32> to vector<8x256xf32>
    %170 = vector.broadcast %7 : vector<1x256xf32> to vector<8x256xf32>
    %171 = arith.addf %169, %170 : vector<8x256xf32>
    %172 = math.tanh %171 : vector<8x256xf32>
    %173 = arith.mulf %172, %27 : vector<8x256xf32>
    %174 = arith.addf %173, %30 : vector<8x256xf32>
    %175 = vector.extract_strided_slice %174 {offsets = [0, 0], sizes = [8, 128], strides = [1, 1]} : vector<8x256xf32> to vector<8x128xf32>
    %176 = vector.extract_strided_slice %174 {offsets = [0, 128], sizes = [8, 128], strides = [1, 1]} : vector<8x256xf32> to vector<8x128xf32>
    %177 = arith.select %10, %176, %150 : vector<8x128xi1>, vector<8x128xf32>
    %178 = arith.mulf %175, %177 : vector<8x128xf32>
    %c64_i32_34 = arith.constant 64 : i32
    %179 = tpu.dynamic_rotate %178 by %c64_i32_34 dim 1 : vector<8x128xf32>, i32 -> vector<8x128xf32>
    %180 = arith.addf %178, %179 : vector<8x128xf32>
    %181 = math.tanh %180 : vector<8x128xf32>
    %182 = arith.mulf %176, %181 : vector<8x128xf32>
    %183 = vector.extract_strided_slice %5 {offsets = [40, 0], sizes = [8, 256], strides = [1, 1]} : vector<64x256xf32> to vector<8x256xf32>
    %184 = arith.addf %183, %168 : vector<8x256xf32>
    %185 = math.tanh %184 : vector<8x256xf32>
    %186 = arith.mulf %185, %16 : vector<8x256xf32>
    %187 = arith.addf %186, %19 : vector<8x256xf32>
    %188 = vector.extract_strided_slice %187 {offsets = [0, 0], sizes = [8, 128], strides = [1, 1]} : vector<8x256xf32> to vector<8x128xf32>
    %189 = vector.extract_strided_slice %187 {offsets = [0, 128], sizes = [8, 128], strides = [1, 1]} : vector<8x256xf32> to vector<8x128xf32>
    %190 = arith.select %10, %163, %189 : vector<8x128xi1>, vector<8x128xf32>
    %191 = arith.mulf %188, %190 : vector<8x128xf32>
    %c64_i32_35 = arith.constant 64 : i32
    %192 = tpu.dynamic_rotate %191 by %c64_i32_35 dim 1 : vector<8x128xf32>, i32 -> vector<8x128xf32>
    %193 = arith.addf %191, %192 : vector<8x128xf32>
    %194 = math.tanh %193 : vector<8x128xf32>
    %195 = arith.mulf %189, %194 : vector<8x128xf32>
    %196 = arith.select %10, %195, %182 : vector<8x128xi1>, vector<8x128xf32>
    %cst_36 = arith.constant dense<0.000000e+00> : vector<8x512xf32>
    %197 = tpu.matmul %196, %6, %cst_36 {dimension_numbers = #tpu.dot_dimension_numbers<[1], [0], [0], [1], [0, 0, 1, 1], [], []>} : vector<8x128xf32>, vector<128x512xf32>, vector<8x512xf32> -> vector<8x512xf32>
    %198 = vector.extract_strided_slice %197 {offsets = [0, 0], sizes = [8, 256], strides = [1, 1]} : vector<8x512xf32> to vector<8x256xf32>
    %199 = vector.extract_strided_slice %197 {offsets = [0, 256], sizes = [8, 256], strides = [1, 1]} : vector<8x512xf32> to vector<8x256xf32>
    %200 = vector.broadcast %7 : vector<1x256xf32> to vector<8x256xf32>
    %201 = arith.addf %199, %200 : vector<8x256xf32>
    %202 = math.tanh %201 : vector<8x256xf32>
    %203 = arith.mulf %202, %27 : vector<8x256xf32>
    %204 = arith.addf %203, %30 : vector<8x256xf32>
    %205 = vector.extract_strided_slice %204 {offsets = [0, 0], sizes = [8, 128], strides = [1, 1]} : vector<8x256xf32> to vector<8x128xf32>
    %206 = vector.extract_strided_slice %204 {offsets = [0, 128], sizes = [8, 128], strides = [1, 1]} : vector<8x256xf32> to vector<8x128xf32>
    %207 = arith.select %10, %206, %180 : vector<8x128xi1>, vector<8x128xf32>
    %208 = arith.mulf %205, %207 : vector<8x128xf32>
    %c64_i32_37 = arith.constant 64 : i32
    %209 = tpu.dynamic_rotate %208 by %c64_i32_37 dim 1 : vector<8x128xf32>, i32 -> vector<8x128xf32>
    %210 = arith.addf %208, %209 : vector<8x128xf32>
    %211 = math.tanh %210 : vector<8x128xf32>
    %212 = arith.mulf %206, %211 : vector<8x128xf32>
    %213 = vector.extract_strided_slice %5 {offsets = [48, 0], sizes = [8, 256], strides = [1, 1]} : vector<64x256xf32> to vector<8x256xf32>
    %214 = arith.addf %213, %198 : vector<8x256xf32>
    %215 = math.tanh %214 : vector<8x256xf32>
    %216 = arith.mulf %215, %16 : vector<8x256xf32>
    %217 = arith.addf %216, %19 : vector<8x256xf32>
    %218 = vector.extract_strided_slice %217 {offsets = [0, 0], sizes = [8, 128], strides = [1, 1]} : vector<8x256xf32> to vector<8x128xf32>
    %219 = vector.extract_strided_slice %217 {offsets = [0, 128], sizes = [8, 128], strides = [1, 1]} : vector<8x256xf32> to vector<8x128xf32>
    %220 = arith.select %10, %193, %219 : vector<8x128xi1>, vector<8x128xf32>
    %221 = arith.mulf %218, %220 : vector<8x128xf32>
    %c64_i32_38 = arith.constant 64 : i32
    %222 = tpu.dynamic_rotate %221 by %c64_i32_38 dim 1 : vector<8x128xf32>, i32 -> vector<8x128xf32>
    %223 = arith.addf %221, %222 : vector<8x128xf32>
    %224 = math.tanh %223 : vector<8x128xf32>
    %225 = arith.mulf %219, %224 : vector<8x128xf32>
    %226 = arith.select %10, %225, %212 : vector<8x128xi1>, vector<8x128xf32>
    %cst_39 = arith.constant dense<0.000000e+00> : vector<8x512xf32>
    %227 = tpu.matmul %226, %6, %cst_39 {dimension_numbers = #tpu.dot_dimension_numbers<[1], [0], [0], [1], [0, 0, 1, 1], [], []>} : vector<8x128xf32>, vector<128x512xf32>, vector<8x512xf32> -> vector<8x512xf32>
    %228 = vector.extract_strided_slice %227 {offsets = [0, 0], sizes = [8, 256], strides = [1, 1]} : vector<8x512xf32> to vector<8x256xf32>
    %229 = vector.extract_strided_slice %227 {offsets = [0, 256], sizes = [8, 256], strides = [1, 1]} : vector<8x512xf32> to vector<8x256xf32>
    %230 = vector.broadcast %7 : vector<1x256xf32> to vector<8x256xf32>
    %231 = arith.addf %229, %230 : vector<8x256xf32>
    %232 = math.tanh %231 : vector<8x256xf32>
    %233 = arith.mulf %232, %27 : vector<8x256xf32>
    %234 = arith.addf %233, %30 : vector<8x256xf32>
    %235 = vector.extract_strided_slice %234 {offsets = [0, 0], sizes = [8, 128], strides = [1, 1]} : vector<8x256xf32> to vector<8x128xf32>
    %236 = vector.extract_strided_slice %234 {offsets = [0, 128], sizes = [8, 128], strides = [1, 1]} : vector<8x256xf32> to vector<8x128xf32>
    %237 = arith.select %10, %236, %210 : vector<8x128xi1>, vector<8x128xf32>
    %238 = arith.mulf %235, %237 : vector<8x128xf32>
    %c64_i32_40 = arith.constant 64 : i32
    %239 = tpu.dynamic_rotate %238 by %c64_i32_40 dim 1 : vector<8x128xf32>, i32 -> vector<8x128xf32>
    %240 = arith.addf %238, %239 : vector<8x128xf32>
    %241 = math.tanh %240 : vector<8x128xf32>
    %242 = arith.mulf %236, %241 : vector<8x128xf32>
    %243 = vector.extract_strided_slice %5 {offsets = [56, 0], sizes = [8, 256], strides = [1, 1]} : vector<64x256xf32> to vector<8x256xf32>
    %244 = arith.addf %243, %228 : vector<8x256xf32>
    %245 = math.tanh %244 : vector<8x256xf32>
    %246 = arith.mulf %245, %16 : vector<8x256xf32>
    %247 = arith.addf %246, %19 : vector<8x256xf32>
    %248 = vector.extract_strided_slice %247 {offsets = [0, 0], sizes = [8, 128], strides = [1, 1]} : vector<8x256xf32> to vector<8x128xf32>
    %249 = vector.extract_strided_slice %247 {offsets = [0, 128], sizes = [8, 128], strides = [1, 1]} : vector<8x256xf32> to vector<8x128xf32>
    %250 = arith.select %10, %223, %249 : vector<8x128xi1>, vector<8x128xf32>
    %251 = arith.mulf %248, %250 : vector<8x128xf32>
    %c64_i32_41 = arith.constant 64 : i32
    %252 = tpu.dynamic_rotate %251 by %c64_i32_41 dim 1 : vector<8x128xf32>, i32 -> vector<8x128xf32>
    %253 = arith.addf %251, %252 : vector<8x128xf32>
    %254 = math.tanh %253 : vector<8x128xf32>
    %255 = arith.mulf %249, %254 : vector<8x128xf32>
    %256 = arith.select %10, %255, %242 : vector<8x128xi1>, vector<8x128xf32>
    %cst_42 = arith.constant dense<0.000000e+00> : vector<8x512xf32>
    %257 = tpu.matmul %256, %6, %cst_42 {dimension_numbers = #tpu.dot_dimension_numbers<[1], [0], [0], [1], [0, 0, 1, 1], [], []>} : vector<8x128xf32>, vector<128x512xf32>, vector<8x512xf32> -> vector<8x512xf32>
    %258 = vector.extract_strided_slice %257 {offsets = [0, 256], sizes = [8, 256], strides = [1, 1]} : vector<8x512xf32> to vector<8x256xf32>
    %259 = vector.broadcast %7 : vector<1x256xf32> to vector<8x256xf32>
    %260 = arith.addf %258, %259 : vector<8x256xf32>
    %261 = math.tanh %260 : vector<8x256xf32>
    %262 = arith.mulf %261, %27 : vector<8x256xf32>
    %263 = arith.addf %262, %30 : vector<8x256xf32>
    %264 = vector.extract_strided_slice %263 {offsets = [0, 0], sizes = [8, 128], strides = [1, 1]} : vector<8x256xf32> to vector<8x128xf32>
    %265 = vector.extract_strided_slice %263 {offsets = [0, 128], sizes = [8, 128], strides = [1, 1]} : vector<8x256xf32> to vector<8x128xf32>
    %266 = arith.select %10, %265, %240 : vector<8x128xi1>, vector<8x128xf32>
    %267 = arith.mulf %264, %266 : vector<8x128xf32>
    %c64_i32_43 = arith.constant 64 : i32
    %268 = tpu.dynamic_rotate %267 by %c64_i32_43 dim 1 : vector<8x128xf32>, i32 -> vector<8x128xf32>
    %269 = arith.addf %267, %268 : vector<8x128xf32>
    %270 = math.tanh %269 : vector<8x128xf32>
    %271 = arith.mulf %265, %270 : vector<8x128xf32>
    %c0_44 = arith.constant 0 : index
    %c0_45 = arith.constant 0 : index
    %272 = vector.load %arg5[%c0_44, %c0_45] : memref<1x128xf32, #tpu.memory_space<vmem>>, vector<1x128xf32>
    %273 = vector.broadcast %272 : vector<1x128xf32> to vector<8x128xf32>
    %274 = arith.mulf %271, %273 : vector<8x128xf32>
    %cst_46 = arith.constant dense<0.000000e+00> : vector<8xf32>
    %275 = vector.multi_reduction <add>, %274, %cst_46 [1] : vector<8x128xf32> to vector<8xf32>
    %276 = vector.shape_cast %275 : vector<8xf32> to vector<8x1xf32>
    %c0_47 = arith.constant 0 : index
    %c0_48 = arith.constant 0 : index
    %277 = vector.load %arg6[%c0_47, %c0_48] : memref<1x1xf32, #tpu.memory_space<vmem>>, vector<1x1xf32>
    %278 = vector.broadcast %277 : vector<1x1xf32> to vector<8x1xf32>
    %279 = arith.addf %276, %278 : vector<8x1xf32>
    %c0_49 = arith.constant 0 : index
    %c0_50 = arith.constant 0 : index
    %280 = vector.load %arg7[%c0_49, %c0_50] : memref<8x1xf32, #tpu.memory_space<vmem>>, vector<8x1xf32>
    tpu.vector_store %arg7[%c0_49, %c0_50], %279 {strides = array<i32>} : memref<8x1xf32, #tpu.memory_space<vmem>>, vector<8x1xf32>,
    return
  }
}

</mosaic_0001>

<llo_original>
// kernel: rnn_model_forward.1
$region0: #{rnn_model_forward.1}
  #allocation0 [shape = 'u32[]', space=smem, size = 0x4, offset = 0x4, fixed_abs, tag = 'smem constant byte address 0x4 - core index']
  #allocation1 [shape = 'u32[144,128]{1,0:T(1,128)}', space=vmem, size = 0x12000, scoped, tag = 'internal scratch']
  #allocation2 [shape = 'f32[1,1]{1,0:T(1,128)S(1)}', space=vmem, size = 0x200, scoped, tag = 'scoped memory for rnn_model_forward.1']
  %s0 = inlined_call_operand.vmem [shape: f32[64,4], index: 0, kind: input, shape index: {}]
  %s1 = inlined_call_operand.vmem [shape: f32[4,256], index: 1, kind: input, shape index: {}]
  %s2 = inlined_call_operand.vmem [shape: f32[1,256], index: 2, kind: input, shape index: {}]
  %s3 = inlined_call_operand.hbm [shape: f32[128,512], index: 3, kind: input, shape index: {}]
  %s4 = inlined_call_operand.vmem [shape: f32[1,256], index: 4, kind: input, shape index: {}]
  %s5 = inlined_call_operand.vmem [shape: f32[1,128], index: 5, kind: input, shape index: {}]
  %s6 = inlined_call_operand.<no memory space> [shape: f32[1,1], index: 6, kind: input, shape index: {}]
  %s7 = inlined_call_operand.vmem [shape: f32[8,1], index: 7, kind: output, shape index: {}]
  %s8 = sld [smem:[#allocation0]]
  $region42: #{rnn_model_forward.1} parent=0
    _
  %s10 = ssub.s32 1, %s8
  %s11 = scalar_select 0, %s10, %s8
  %v12 = vstv %s6
  %13 = vst [vmem:[#allocation2] sm:$0x1] %v12
  $region1: #{rnn_model_forward.1} parent=0
    #allocation3 [shape = 'u8[262144]{0}', space=vmem, size = 0x40000, scoped, tag = 'input window, operand 3, single buffered']
    #allocation4 [shape = 's32[1]{0}', space=sflag, size = 0x4, scoped, tag = 'scoped memory for rnn_model_forward.1']
    %14 = vsyncpa [#allocation4], 0
    // Predicated region
    $region2: #{rnn_model_forward.1} parent=1 // pred_check
      _
    $region3: #{rnn_model_forward.1} parent=1 // pred_check_branch
      %16 = sbr.rel (0) target = $region5
    $region4: #{rnn_model_forward.1} parent=1 // pred_region
      _
    $region5: #{rnn_model_forward.1} parent=1 // pred_fallthru
      _
    // Predicated region
    $region6: #{rnn_model_forward.1} parent=1 // pred_check
      _
    $region7: #{rnn_model_forward.1} parent=1 // pred_check_branch
      %18 = sbr.rel (0) target = $region9
    $region8: #{rnn_model_forward.1} parent=1 // pred_region
      _
    $region9: #{rnn_model_forward.1} parent=1 // pred_fallthru
      _
    // Predicated region
    $region10: #{rnn_model_forward.1} parent=1 // pred_check
      _
    $region11: #{rnn_model_forward.1} parent=1 // pred_check_branch
      %20 = sbr.rel (0) target = $region13
    $region12: #{rnn_model_forward.1} parent=1 // pred_region
      _
    $region13: #{rnn_model_forward.1} parent=1 // pred_fallthru
      _
    // Predicated region
    $region14: #{rnn_model_forward.1} parent=1 // pred_check
      _
    $region15: #{rnn_model_forward.1} parent=1 // pred_check_branch
      %22 = sbr.rel (0) target = $region17
    $region16: #{rnn_model_forward.1} parent=1 // pred_region
      %s24 = ssub.s32 8192, 8192
      %25 = vsyncadd [#allocation4], %s24
      %s26 = sshll.u32 [#allocation3], 4
      %s27 = int_to_ptr.vmem [resolvable:$true] %s26
      %32 = dma.hbm_to_vmem [thread:$0]  %s3, 8192, %s27, [#allocation4], 512, 512, 32
    $region17: #{rnn_model_forward.1} parent=1 // pred_fallthru
      _
    // Predicated region
    $region18: #{rnn_model_forward.1} parent=1 // pred_check
      _
    $region19: #{rnn_model_forward.1} parent=1 // pred_check_branch
      %34 = sbr.rel (0) target = $region21
    $region20: #{rnn_model_forward.1} parent=1 // pred_region
      _
    $region21: #{rnn_model_forward.1} parent=1 // pred_fallthru
      _
    // Predicated region
    $region22: #{rnn_model_forward.1} parent=1 // pred_check
      _
    $region23: #{rnn_model_forward.1} parent=1 // pred_check_branch
      %36 = sbr.rel (0) target = $region25
    $region24: #{rnn_model_forward.1} parent=1 // pred_region
      _
    $region25: #{rnn_model_forward.1} parent=1 // pred_fallthru
      _
    // Predicated region
    $region26: #{rnn_model_forward.1} parent=1 // pred_check
      _
    $region27: #{rnn_model_forward.1} parent=1 // pred_check_branch
      %38 = sbr.rel (0) target = $region29
    $region28: #{rnn_model_forward.1} parent=1 // pred_region
      _
    $region29: #{rnn_model_forward.1} parent=1 // pred_fallthru
      _
    // Predicated region
    $region30: #{rnn_model_forward.1} parent=1 // pred_check
      _
    $region31: #{rnn_model_forward.1} parent=1 // pred_check_branch
      %40 = sbr.rel (0) target = $region33
    $region32: #{rnn_model_forward.1} parent=1 // pred_region
      %41 = dma.done [#allocation4], 8192
    $region33: #{rnn_model_forward.1} parent=1 // pred_fallthru
      _
    %v42 = vld [vmem:[%s0] sm:$0xff]
    %v43 = vld [vmem:[%s0 + $0x8] sm:$0xff]
    %v44 = vld [vmem:[%s0 + $0x10] sm:$0xff]
    %v45 = vld [vmem:[%s0 + $0x18] sm:$0xff]
    %v46 = vld [vmem:[%s0 + $0x20] sm:$0xff]
    %v47 = vld [vmem:[%s0 + $0x28] sm:$0xff]
    %v48 = vld [vmem:[%s0 + $0x30] sm:$0xff]
    %v49 = vld [vmem:[%s0 + $0x38] sm:$0xff]
    %v50 = vld [vmem:[%s1] sm:$0xff]
    %v51 = vld [vmem:[%s2] sm:$0x3]
    %v53 = vlaneseq
    %v54 = vshrl.u32 %v53, 7
    %v55 = vsub.s32 0, %v54
    %v56 = vrot.slane %v51, %v55
    %v57 = vlaneseq
    %v58 = vshrl.u32 %v57, 7
    %v59 = vsub.s32 1, %v58
    %v60 = vrot.slane %v51, %v59
    %v64 = vcombine.high %v50, %v50
    %vm65 = vcmask 31744
    %v67 = vsel %vm65, %v42, 0
    %v70 = vsel %vm65, %v43, 0
    %v73 = vsel %vm65, %v44, 0
    %v76 = vsel %vm65, %v45, 0
    %v79 = vsel %vm65, %v46, 0
    %v82 = vsel %vm65, %v47, 0
    %v85 = vsel %vm65, %v48, 0
    %v88 = vsel %vm65, %v49, 0
    %vm90 = vcmask 1043456
    %v91 = vsel %vm90, %v50, 0
    %v93 = vsel %vm90, %v64, 0
    %95 = vmatprep.subr.mxu0 %v93
    %96 = vmatpush1.msra.mxu0 %v91
    %97 = vmatprep.subr.mxu0 0.0
    %98 = vmatpush1.msra.mxu0 0.0
    %99 = vmatprep.subr.mxu0 0.0
    %100 = vmatpush1.msra.mxu0 0.0
    %101 = vmatprep.subr.mxu0 0.0
    %102 = vmatpush1.msra.mxu0 0.0
    %103 = vmatprep.subr.mxu0 0.0
    %104 = vmatpush1.msra.mxu0 0.0
    %105 = vmatprep.subr.mxu0 0.0
    %106 = vmatpush1.msra.mxu0 0.0
    %107 = vmatprep.subr.mxu0 0.0
    %108 = vmatpush1.msra.mxu0 0.0
    %109 = vmatprep.subr.mxu0 0.0
    %110 = vmatpush1.msra.mxu0 0.0
    %111 = vmatprep.subr.mxu0 0.0
    %112 = vmatpush1.msra.mxu0 0.0
    %113 = vmatprep.subr.mxu0 0.0
    %114 = vmatpush1.msra.mxu0 0.0
    %115 = vmatprep.subr.mxu0 0.0
    %116 = vmatpush1.msra.mxu0 0.0
    %117 = vmatprep.subr.mxu0 0.0
    %118 = vmatpush1.msra.mxu0 0.0
    %119 = vmatprep.subr.mxu0 0.0
    %120 = vmatpush1.msra.mxu0 0.0
    %121 = vmatprep.subr.mxu0 0.0
    %122 = vmatpush1.msra.mxu0 0.0
    %123 = vmatprep.subr.mxu0 0.0
    %124 = vmatpush1.msra.mxu0 0.0
    %125 = vmatprep.subr.mxu0 0.0
    %126 = vmatpush1.msra.mxu0 0.0
    %127 = vmatprep.subr.mxu0 0.0
    %128 = vmatpush1.msra.mxu0 0.0
    %129 = vmatprep.subr.mxu0 0.0
    %130 = vmatpush1.msra.mxu0 0.0
    %131 = vmatprep.subr.mxu0 0.0
    %132 = vmatpush1.msra.mxu0 0.0
    %133 = vmatprep.subr.mxu0 0.0
    %134 = vmatpush1.msra.mxu0 0.0
    %135 = vmatprep.subr.mxu0 0.0
    %136 = vmatpush1.msra.mxu0 0.0
    %137 = vmatprep.subr.mxu0 0.0
    %138 = vmatpush1.msra.mxu0 0.0
    %139 = vmatprep.subr.mxu0 0.0
    %140 = vmatpush1.msra.mxu0 0.0
    %141 = vmatprep.subr.mxu0 0.0
    %142 = vmatpush1.msra.mxu0 0.0
    %143 = vmatprep.subr.mxu0 0.0
    %144 = vmatpush1.msra.mxu0 0.0
    %145 = vmatprep.subr.mxu0 0.0
    %146 = vmatpush1.msra.mxu0 0.0
    %147 = vmatprep.subr.mxu0 0.0
    %148 = vmatpush1.msra.mxu0 0.0
    %149 = vmatprep.subr.mxu0 0.0
    %150 = vmatpush1.msra.mxu0 0.0
    %151 = vmatprep.subr.mxu0 0.0
    %152 = vmatpush1.msra.mxu0 0.0
    %153 = vmatprep.subr.mxu0 0.0
    %154 = vmatpush1.msra.mxu0 0.0
    %155 = vmatprep.subr.mxu0 0.0
    %156 = vmatpush1.msra.mxu0 0.0
    %157 = vmatprep.subr.mxu0 0.0
    %158 = vmatpush1.msra.mxu0 0.0
    %159 = vmatprep.mubr.f32.mxu0 0.0
    %160 = vmatmul.mubr.f32.gmra.mrb[0].mxu0 %v67
    %v161 = vpop.f32.mrb[0].mxu0
    %v162 = vadd.f32 %v56, %v161
    %v163 = vpop.f32.mrb[0].mxu0
    %v164 = vadd.f32 %v60, %v163
    %165 = vmatprep.mubr.f32.mxu0 0.0
    %166 = vmatmul.mubr.f32.gmra.mrb[0].mxu0 %v70
    %v167 = vpop.f32.mrb[0].mxu0
    %v168 = vadd.f32 %v56, %v167
    %v169 = vpop.f32.mrb[0].mxu0
    %v170 = vadd.f32 %v60, %v169
    %171 = vmatprep.mubr.f32.mxu0 0.0
    %172 = vmatmul.mubr.f32.gmra.mrb[0].mxu0 %v73
    %v173 = vpop.f32.mrb[0].mxu0
    %v174 = vadd.f32 %v56, %v173
    %v175 = vpop.f32.mrb[0].mxu0
    %v176 = vadd.f32 %v60, %v175
    %177 = vmatprep.mubr.f32.mxu0 0.0
    %178 = vmatmul.mubr.f32.gmra.mrb[0].mxu0 %v76
    %v179 = vpop.f32.mrb[0].mxu0
    %v180 = vadd.f32 %v56, %v179
    %v181 = vpop.f32.mrb[0].mxu0
    %v182 = vadd.f32 %v60, %v181
    %183 = vmatprep.mubr.f32.mxu0 0.0
    %184 = vmatmul.mubr.f32.gmra.mrb[0].mxu0 %v79
    %v185 = vpop.f32.mrb[0].mxu0
    %v186 = vadd.f32 %v56, %v185
    %v187 = vpop.f32.mrb[0].mxu0
    %v188 = vadd.f32 %v60, %v187
    %189 = vmatprep.mubr.f32.mxu0 0.0
    %190 = vmatmul.mubr.f32.gmra.mrb[0].mxu0 %v82
    %v191 = vpop.f32.mrb[0].mxu0
    %v192 = vadd.f32 %v56, %v191
    %v193 = vpop.f32.mrb[0].mxu0
    %v194 = vadd.f32 %v60, %v193
    %195 = vmatprep.mubr.f32.mxu0 0.0
    %196 = vmatmul.mubr.f32.gmra.mrb[0].mxu0 %v85
    %v197 = vpop.f32.mrb[0].mxu0
    %v198 = vadd.f32 %v56, %v197
    %v199 = vpop.f32.mrb[0].mxu0
    %v200 = vadd.f32 %v60, %v199
    %201 = vmatprep.mubr.f32.mxu0 0.0
    %202 = vmatmul.mubr.f32.gmra.mrb[0].mxu0 %v88
    %v203 = vpop.f32.mrb[0].mxu0
    %v204 = vadd.f32 %v56, %v203
    %v205 = vpop.f32.mrb[0].mxu0
    %v206 = vadd.f32 %v60, %v205
    %207 = vdwg.mxu0
    %v208 = vld [vmem:[#allocation3] sm:$0xff]
    %v209 = vld [vmem:[#allocation3 + $0x8] sm:$0xff]
    %v210 = vld [vmem:[#allocation3 + $0x10] sm:$0xff]
    %v211 = vld [vmem:[#allocation3 + $0x18] sm:$0xff]
    %v212 = vld [vmem:[#allocation3 + $0x20] sm:$0xff]
    %v213 = vld [vmem:[#allocation3 + $0x28] sm:$0xff]
    %v214 = vld [vmem:[#allocation3 + $0x30] sm:$0xff]
    %v215 = vld [vmem:[#allocation3 + $0x38] sm:$0xff]
    %v216 = vld [vmem:[#allocation3 + $0x40] sm:$0xff]
    %v217 = vld [vmem:[#allocation3 + $0x48] sm:$0xff]
    %v218 = vld [vmem:[#allocation3 + $0x50] sm:$0xff]
    %v219 = vld [vmem:[#allocation3 + $0x58] sm:$0xff]
    %v220 = vld [vmem:[#allocation3 + $0x60] sm:$0xff]
    %v221 = vld [vmem:[#allocation3 + $0x68] sm:$0xff]
    %v222 = vld [vmem:[#allocation3 + $0x70] sm:$0xff]
    %v223 = vld [vmem:[#allocation3 + $0x78] sm:$0xff]
    %v224 = vld [vmem:[#allocation3 + $0x80] sm:$0xff]
    %v225 = vld [vmem:[#allocation3 + $0x88] sm:$0xff]
    %v226 = vld [vmem:[#allocation3 + $0x90] sm:$0xff]
    %v227 = vld [vmem:[#allocation3 + $0x98] sm:$0xff]
    %v228 = vld [vmem:[#allocation3 + $0xa0] sm:$0xff]
    %v229 = vld [vmem:[#allocation3 + $0xa8] sm:$0xff]
    %v230 = vld [vmem:[#allocation3 + $0xb0] sm:$0xff]
    %v231 = vld [vmem:[#allocation3 + $0xb8] sm:$0xff]
    %v232 = vld [vmem:[#allocation3 + $0xc0] sm:$0xff]
    %v233 = vld [vmem:[#allocation3 + $0xc8] sm:$0xff]
    %v234 = vld [vmem:[#allocation3 + $0xd0] sm:$0xff]
    %v235 = vld [vmem:[#allocation3 + $0xd8] sm:$0xff]
    %v236 = vld [vmem:[#allocation3 + $0xe0] sm:$0xff]
    %v237 = vld [vmem:[#allocation3 + $0xe8] sm:$0xff]
    %v238 = vld [vmem:[#allocation3 + $0xf0] sm:$0xff]
    %v239 = vld [vmem:[#allocation3 + $0xf8] sm:$0xff]
    %v240 = vld [vmem:[#allocation3 + $0x100] sm:$0xff]
    %v241 = vld [vmem:[#allocation3 + $0x108] sm:$0xff]
    %v242 = vld [vmem:[#allocation3 + $0x110] sm:$0xff]
    %v243 = vld [vmem:[#allocation3 + $0x118] sm:$0xff]
    %v244 = vld [vmem:[#allocation3 + $0x120] sm:$0xff]
    %v245 = vld [vmem:[#allocation3 + $0x128] sm:$0xff]
    %v246 = vld [vmem:[#allocation3 + $0x130] sm:$0xff]
    %v247 = vld [vmem:[#allocation3 + $0x138] sm:$0xff]
    %v248 = vld [vmem:[#allocation3 + $0x140] sm:$0xff]
    %v249 = vld [vmem:[#allocation3 + $0x148] sm:$0xff]
    %v250 = vld [vmem:[#allocation3 + $0x150] sm:$0xff]
    %v251 = vld [vmem:[#allocation3 + $0x158] sm:$0xff]
    %v252 = vld [vmem:[#allocation3 + $0x160] sm:$0xff]
    %v253 = vld [vmem:[#allocation3 + $0x168] sm:$0xff]
    %v254 = vld [vmem:[#allocation3 + $0x170] sm:$0xff]
    %v255 = vld [vmem:[#allocation3 + $0x178] sm:$0xff]
    %v256 = vld [vmem:[#allocation3 + $0x180] sm:$0xff]
    %v257 = vld [vmem:[#allocation3 + $0x188] sm:$0xff]
    %v258 = vld [vmem:[#allocation3 + $0x190] sm:$0xff]
    %v259 = vld [vmem:[#allocation3 + $0x198] sm:$0xff]
    %v260 = vld [vmem:[#allocation3 + $0x1a0] sm:$0xff]
    %v261 = vld [vmem:[#allocation3 + $0x1a8] sm:$0xff]
    %v262 = vld [vmem:[#allocation3 + $0x1b0] sm:$0xff]
    %v263 = vld [vmem:[#allocation3 + $0x1b8] sm:$0xff]
    %v264 = vld [vmem:[#allocation3 + $0x1c0] sm:$0xff]
    %v265 = vld [vmem:[#allocation3 + $0x1c8] sm:$0xff]
    %v266 = vld [vmem:[#allocation3 + $0x1d0] sm:$0xff]
    %v267 = vld [vmem:[#allocation3 + $0x1d8] sm:$0xff]
    %v268 = vld [vmem:[#allocation3 + $0x1e0] sm:$0xff]
    %v269 = vld [vmem:[#allocation3 + $0x1e8] sm:$0xff]
    %v270 = vld [vmem:[#allocation3 + $0x1f0] sm:$0xff]
    %v271 = vld [vmem:[#allocation3 + $0x1f8] sm:$0xff]
    %v272 = vld [vmem:[%s4] sm:$0x3]
    %v273 = vlaneseq
    %v274 = vand.u32 %v273, 127
    %vm275 = vcmp.lt.s32.totalorder %v274, 64
    %v276 = vadd.s32 %v274, 128
    %vm277 = vcmp.ge.s32.totalorder %v274, 192
    %vm278 = vcmp.ge.s32.totalorder %v276, 192
    %v279 = vsel %vm277, 1.0, 0.5
    %v280 = vsel %vm278, 1.0, 0.5
    %v281 = vsel %vm277, 0.0, 0.5
    %v282 = vsel %vm278, 0.0, 0.5
    %vm283 = vcmp.ge.s32.totalorder %v274, 128
    %vm284 = vcmp.ge.s32.totalorder %v276, 128
    %vm285 = vcmp.lt.s32.totalorder %v274, 192
    %vm286 = vcmp.lt.s32.totalorder %v276, 192
    %vm287 = vmand %vm283, %vm285
    %vm288 = vmand %vm284, %vm286
    %v289 = vsel %vm287, 1.0, 0.5
    %v290 = vsel %vm288, 1.0, 0.5
    %v291 = vsel %vm287, 0.0, 0.5
    %v292 = vsel %vm288, 0.0, 0.5
    %v293 = vadd.f32 %v162, 0.0
    %v294 = vadd.f32 %v164, 0.0
    %v295 = vtanh.pop %v293
    %v296 = vtanh.pop %v294
    %v297 = vmul.f32 %v295, %v279
    %v298 = vmul.f32 %v296, %v280
    %v299 = vadd.f32 %v297, %v281
    %v300 = vadd.f32 %v298, %v282
    %v301 = vsel %vm275, 0.0, %v300
    %v302 = vmul.f32 %v299, %v301
    %303 = vrot.lane.b32.xlu0 %v302, 64
    %v304 = vpop.permute.xlu0 %303
    %v305 = vadd.f32 %v302, %v304
    %v306 = vtanh.pop %v305
    %v307 = vmul.f32 %v300, %v306
    %v308 = vsel %vm275, %v307, 0.0
    %309 = vmatprep.subr.mxu0 %v209
    %310 = vmatpush1.msra.mxu0 %v208
    %311 = vmatprep.subr.mxu0 %v213
    %312 = vmatpush1.msra.mxu0 %v212
    %313 = vmatprep.subr.mxu0 %v217
    %314 = vmatpush1.msra.mxu0 %v216
    %315 = vmatprep.subr.mxu0 %v221
    %316 = vmatpush1.msra.mxu0 %v220
    %317 = vmatprep.subr.mxu0 %v225
    %318 = vmatpush1.msra.mxu0 %v224
    %319 = vmatprep.subr.mxu0 %v229
    %320 = vmatpush1.msra.mxu0 %v228
    %321 = vmatprep.subr.mxu0 %v233
    %322 = vmatpush1.msra.mxu0 %v232
    %323 = vmatprep.subr.mxu0 %v237
    %324 = vmatpush1.msra.mxu0 %v236
    %325 = vmatprep.subr.mxu0 %v241
    %326 = vmatpush1.msra.mxu0 %v240
    %327 = vmatprep.subr.mxu0 %v245
    %328 = vmatpush1.msra.mxu0 %v244
    %329 = vmatprep.subr.mxu0 %v249
    %330 = vmatpush1.msra.mxu0 %v248
    %331 = vmatprep.subr.mxu0 %v253
    %332 = vmatpush1.msra.mxu0 %v252
    %333 = vmatprep.subr.mxu0 %v257
    %334 = vmatpush1.msra.mxu0 %v256
    %335 = vmatprep.subr.mxu0 %v261
    %336 = vmatpush1.msra.mxu0 %v260
    %337 = vmatprep.subr.mxu0 %v265
    %338 = vmatpush1.msra.mxu0 %v264
    %339 = vmatprep.subr.mxu0 %v269
    %340 = vmatpush1.msra.mxu0 %v268
    %341 = vmatprep.subr.mxu0 0.0
    %342 = vmatpush1.msra.mxu0 0.0
    %343 = vmatprep.subr.mxu0 0.0
    %344 = vmatpush1.msra.mxu0 0.0
    %345 = vmatprep.subr.mxu0 0.0
    %346 = vmatpush1.msra.mxu0 0.0
    %347 = vmatprep.subr.mxu0 0.0
    %348 = vmatpush1.msra.mxu0 0.0
    %349 = vmatprep.subr.mxu0 0.0
    %350 = vmatpush1.msra.mxu0 0.0
    %351 = vmatprep.subr.mxu0 0.0
    %352 = vmatpush1.msra.mxu0 0.0
    %353 = vmatprep.subr.mxu0 0.0
    %354 = vmatpush1.msra.mxu0 0.0
    %355 = vmatprep.subr.mxu0 0.0
    %356 = vmatpush1.msra.mxu0 0.0
    %357 = vmatprep.subr.mxu0 0.0
    %358 = vmatpush1.msra.mxu0 0.0
    %359 = vmatprep.subr.mxu0 0.0
    %360 = vmatpush1.msra.mxu0 0.0
    %361 = vmatprep.subr.mxu0 0.0
    %362 = vmatpush1.msra.mxu0 0.0
    %363 = vmatprep.subr.mxu0 0.0
    %364 = vmatpush1.msra.mxu0 0.0
    %365 = vmatprep.subr.mxu0 0.0
    %366 = vmatpush1.msra.mxu0 0.0
    %367 = vmatprep.subr.mxu0 0.0
    %368 = vmatpush1.msra.mxu0 0.0
    %369 = vmatprep.subr.mxu0 0.0
    %370 = vmatpush1.msra.mxu0 0.0
    %371 = vmatprep.subr.mxu0 0.0
    %372 = vmatpush1.msra.mxu0 0.0
    %373 = vmatprep.mubr.f32.mxu0 0.0
    %374 = vmatmul.mubr.f32.gmra.mrb[0].mxu0 %v308
    %v375 = vpop.f32.mrb[0].mxu0
    %v376 = vadd.f32 0.0, %v375
    %v377 = vpop.f32.mrb[0].mxu0
    %v378 = vadd.f32 0.0, %v377
    %379 = vdwg.mxu0
    %380 = vmatprep.subr.mxu0 %v211
    %381 = vmatpush1.msra.mxu0 %v210
    %382 = vmatprep.subr.mxu0 %v215
    %383 = vmatpush1.msra.mxu0 %v214
    %384 = vmatprep.subr.mxu0 %v219
    %385 = vmatpush1.msra.mxu0 %v218
    %386 = vmatprep.subr.mxu0 %v223
    %387 = vmatpush1.msra.mxu0 %v222
    %388 = vmatprep.subr.mxu0 %v227
    %389 = vmatpush1.msra.mxu0 %v226
    %390 = vmatprep.subr.mxu0 %v231
    %391 = vmatpush1.msra.mxu0 %v230
    %392 = vmatprep.subr.mxu0 %v235
    %393 = vmatpush1.msra.mxu0 %v234
    %394 = vmatprep.subr.mxu0 %v239
    %395 = vmatpush1.msra.mxu0 %v238
    %396 = vmatprep.subr.mxu0 %v243
    %397 = vmatpush1.msra.mxu0 %v242
    %398 = vmatprep.subr.mxu0 %v247
    %399 = vmatpush1.msra.mxu0 %v246
    %400 = vmatprep.subr.mxu0 %v251
    %401 = vmatpush1.msra.mxu0 %v250
    %402 = vmatprep.subr.mxu0 %v255
    %403 = vmatpush1.msra.mxu0 %v254
    %404 = vmatprep.subr.mxu0 %v259
    %405 = vmatpush1.msra.mxu0 %v258
    %406 = vmatprep.subr.mxu0 %v263
    %407 = vmatpush1.msra.mxu0 %v262
    %408 = vmatprep.subr.mxu0 %v267
    %409 = vmatpush1.msra.mxu0 %v266
    %410 = vmatprep.subr.mxu0 %v271
    %411 = vmatpush1.msra.mxu0 %v270
    %412 = vmatprep.subr.mxu0 0.0
    %413 = vmatpush1.msra.mxu0 0.0
    %414 = vmatprep.subr.mxu0 0.0
    %415 = vmatpush1.msra.mxu0 0.0
    %416 = vmatprep.subr.mxu0 0.0
    %417 = vmatpush1.msra.mxu0 0.0
    %418 = vmatprep.subr.mxu0 0.0
    %419 = vmatpush1.msra.mxu0 0.0
    %420 = vmatprep.subr.mxu0 0.0
    %421 = vmatpush1.msra.mxu0 0.0
    %422 = vmatprep.subr.mxu0 0.0
    %423 = vmatpush1.msra.mxu0 0.0
    %424 = vmatprep.subr.mxu0 0.0
    %425 = vmatpush1.msra.mxu0 0.0
    %426 = vmatprep.subr.mxu0 0.0
    %427 = vmatpush1.msra.mxu0 0.0
    %428 = vmatprep.subr.mxu0 0.0
    %429 = vmatpush1.msra.mxu0 0.0
    %430 = vmatprep.subr.mxu0 0.0
    %431 = vmatpush1.msra.mxu0 0.0
    %432 = vmatprep.subr.mxu0 0.0
    %433 = vmatpush1.msra.mxu0 0.0
    %434 = vmatprep.subr.mxu0 0.0
    %435 = vmatpush1.msra.mxu0 0.0
    %436 = vmatprep.subr.mxu0 0.0
    %437 = vmatpush1.msra.mxu0 0.0
    %438 = vmatprep.subr.mxu0 0.0
    %439 = vmatpush1.msra.mxu0 0.0
    %440 = vmatprep.subr.mxu0 0.0
    %441 = vmatpush1.msra.mxu0 0.0
    %442 = vmatprep.subr.mxu0 0.0
    %443 = vmatpush1.msra.mxu0 0.0
    %444 = vmatprep.mubr.f32.mxu0 0.0
    %445 = vmatmul.mubr.f32.gmra.mrb[0].mxu0 %v308
    %v446 = vpop.f32.mrb[0].mxu0
    %v447 = vadd.f32 0.0, %v446
    %v448 = vpop.f32.mrb[0].mxu0
    %v449 = vadd.f32 0.0, %v448
    %450 = vdwg.mxu0
    %v452 = vlaneseq
    %v453 = vshrl.u32 %v452, 7
    %v454 = vsub.s32 0, %v453
    %v455 = vrot.slane %v272, %v454
    %v456 = vlaneseq
    %v457 = vshrl.u32 %v456, 7
    %v458 = vsub.s32 1, %v457
    %v459 = vrot.slane %v272, %v458
    %v462 = vadd.f32 %v447, %v455
    %v463 = vadd.f32 %v449, %v459
    %v464 = vtanh.pop %v462
    %v465 = vtanh.pop %v463
    %v466 = vmul.f32 %v464, %v289
    %v467 = vmul.f32 %v465, %v290
    %v468 = vadd.f32 %v466, %v291
    %v469 = vadd.f32 %v467, %v292
    %v470 = vsel %vm275, %v469, 0.0
    %v471 = vmul.f32 %v468, %v470
    %472 = vrot.lane.b32.xlu0 %v471, 64
    %v473 = vpop.permute.xlu0 %472
    %v474 = vadd.f32 %v471, %v473
    %v475 = vtanh.pop %v474
    %v476 = vmul.f32 %v469, %v475
    %v477 = vadd.f32 %v168, %v376
    %v478 = vadd.f32 %v170, %v378
    %v479 = vtanh.pop %v477
    %v480 = vtanh.pop %v478
    %v481 = vmul.f32 %v479, %v279
    %v482 = vmul.f32 %v480, %v280
    %v483 = vadd.f32 %v481, %v281
    %v484 = vadd.f32 %v482, %v282
    %v485 = vsel %vm275, %v305, %v484
    %v486 = vmul.f32 %v483, %v485
    %487 = vrot.lane.b32.xlu0 %v486, 64
    %v488 = vpop.permute.xlu0 %487
    %v489 = vadd.f32 %v486, %v488
    %v490 = vtanh.pop %v489
    %v491 = vmul.f32 %v484, %v490
    %v492 = vsel %vm275, %v491, %v476
    %493 = vmatprep.subr.mxu0 %v209
    %494 = vmatpush1.msra.mxu0 %v208
    %495 = vmatprep.subr.mxu0 %v213
    %496 = vmatpush1.msra.mxu0 %v212
    %497 = vmatprep.subr.mxu0 %v217
    %498 = vmatpush1.msra.mxu0 %v216
    %499 = vmatprep.subr.mxu0 %v221
    %500 = vmatpush1.msra.mxu0 %v220
    %501 = vmatprep.subr.mxu0 %v225
    %502 = vmatpush1.msra.mxu0 %v224
    %503 = vmatprep.subr.mxu0 %v229
    %504 = vmatpush1.msra.mxu0 %v228
    %505 = vmatprep.subr.mxu0 %v233
    %506 = vmatpush1.msra.mxu0 %v232
    %507 = vmatprep.subr.mxu0 %v237
    %508 = vmatpush1.msra.mxu0 %v236
    %509 = vmatprep.subr.mxu0 %v241
    %510 = vmatpush1.msra.mxu0 %v240
    %511 = vmatprep.subr.mxu0 %v245
    %512 = vmatpush1.msra.mxu0 %v244
    %513 = vmatprep.subr.mxu0 %v249
    %514 = vmatpush1.msra.mxu0 %v248
    %515 = vmatprep.subr.mxu0 %v253
    %516 = vmatpush1.msra.mxu0 %v252
    %517 = vmatprep.subr.mxu0 %v257
    %518 = vmatpush1.msra.mxu0 %v256
    %519 = vmatprep.subr.mxu0 %v261
    %520 = vmatpush1.msra.mxu0 %v260
    %521 = vmatprep.subr.mxu0 %v265
    %522 = vmatpush1.msra.mxu0 %v264
    %523 = vmatprep.subr.mxu0 %v269
    %524 = vmatpush1.msra.mxu0 %v268
    %525 = vmatprep.subr.mxu0 0.0
    %526 = vmatpush1.msra.mxu0 0.0
    %527 = vmatprep.subr.mxu0 0.0
    %528 = vmatpush1.msra.mxu0 0.0
    %529 = vmatprep.subr.mxu0 0.0
    %530 = vmatpush1.msra.mxu0 0.0
    %531 = vmatprep.subr.mxu0 0.0
    %532 = vmatpush1.msra.mxu0 0.0
    %533 = vmatprep.subr.mxu0 0.0
    %534 = vmatpush1.msra.mxu0 0.0
    %535 = vmatprep.subr.mxu0 0.0
    %536 = vmatpush1.msra.mxu0 0.0
    %537 = vmatprep.subr.mxu0 0.0
    %538 = vmatpush1.msra.mxu0 0.0
    %539 = vmatprep.subr.mxu0 0.0
    %540 = vmatpush1.msra.mxu0 0.0
    %541 = vmatprep.subr.mxu0 0.0
    %542 = vmatpush1.msra.mxu0 0.0
    %543 = vmatprep.subr.mxu0 0.0
    %544 = vmatpush1.msra.mxu0 0.0
    %545 = vmatprep.subr.mxu0 0.0
    %546 = vmatpush1.msra.mxu0 0.0
    %547 = vmatprep.subr.mxu0 0.0
    %548 = vmatpush1.msra.mxu0 0.0
    %549 = vmatprep.subr.mxu0 0.0
    %550 = vmatpush1.msra.mxu0 0.0
    %551 = vmatprep.subr.mxu0 0.0
    %552 = vmatpush1.msra.mxu0 0.0
    %553 = vmatprep.subr.mxu0 0.0
    %554 = vmatpush1.msra.mxu0 0.0
    %555 = vmatprep.subr.mxu0 0.0
    %556 = vmatpush1.msra.mxu0 0.0
    %557 = vmatprep.mubr.f32.mxu0 0.0
    %558 = vmatmul.mubr.f32.gmra.mrb[0].mxu0 %v492
    %v559 = vpop.f32.mrb[0].mxu0
    %v560 = vadd.f32 0.0, %v559
    %v561 = vpop.f32.mrb[0].mxu0
    %v562 = vadd.f32 0.0, %v561
    %563 = vdwg.mxu0
    %564 = vmatprep.subr.mxu0 %v211
    %565 = vmatpush1.msra.mxu0 %v210
    %566 = vmatprep.subr.mxu0 %v215
    %567 = vmatpush1.msra.mxu0 %v214
    %568 = vmatprep.subr.mxu0 %v219
    %569 = vmatpush1.msra.mxu0 %v218
    %570 = vmatprep.subr.mxu0 %v223
    %571 = vmatpush1.msra.mxu0 %v222
    %572 = vmatprep.subr.mxu0 %v227
    %573 = vmatpush1.msra.mxu0 %v226
    %574 = vmatprep.subr.mxu0 %v231
    %575 = vmatpush1.msra.mxu0 %v230
    %576 = vmatprep.subr.mxu0 %v235
    %577 = vmatpush1.msra.mxu0 %v234
    %578 = vmatprep.subr.mxu0 %v239
    %579 = vmatpush1.msra.mxu0 %v238
    %580 = vmatprep.subr.mxu0 %v243
    %581 = vmatpush1.msra.mxu0 %v242
    %582 = vmatprep.subr.mxu0 %v247
    %583 = vmatpush1.msra.mxu0 %v246
    %584 = vmatprep.subr.mxu0 %v251
    %585 = vmatpush1.msra.mxu0 %v250
    %586 = vmatprep.subr.mxu0 %v255
    %587 = vmatpush1.msra.mxu0 %v254
    %588 = vmatprep.subr.mxu0 %v259
    %589 = vmatpush1.msra.mxu0 %v258
    %590 = vmatprep.subr.mxu0 %v263
    %591 = vmatpush1.msra.mxu0 %v262
    %592 = vmatprep.subr.mxu0 %v267
    %593 = vmatpush1.msra.mxu0 %v266
    %594 = vmatprep.subr.mxu0 %v271
    %595 = vmatpush1.msra.mxu0 %v270
    %596 = vmatprep.subr.mxu0 0.0
    %597 = vmatpush1.msra.mxu0 0.0
    %598 = vmatprep.subr.mxu0 0.0
    %599 = vmatpush1.msra.mxu0 0.0
    %600 = vmatprep.subr.mxu0 0.0
    %601 = vmatpush1.msra.mxu0 0.0
    %602 = vmatprep.subr.mxu0 0.0
    %603 = vmatpush1.msra.mxu0 0.0
    %604 = vmatprep.subr.mxu0 0.0
    %605 = vmatpush1.msra.mxu0 0.0
    %606 = vmatprep.subr.mxu0 0.0
    %607 = vmatpush1.msra.mxu0 0.0
    %608 = vmatprep.subr.mxu0 0.0
    %609 = vmatpush1.msra.mxu0 0.0
    %610 = vmatprep.subr.mxu0 0.0
    %611 = vmatpush1.msra.mxu0 0.0
    %612 = vmatprep.subr.mxu0 0.0
    %613 = vmatpush1.msra.mxu0 0.0
    %614 = vmatprep.subr.mxu0 0.0
    %615 = vmatpush1.msra.mxu0 0.0
    %616 = vmatprep.subr.mxu0 0.0
    %617 = vmatpush1.msra.mxu0 0.0
    %618 = vmatprep.subr.mxu0 0.0
    %619 = vmatpush1.msra.mxu0 0.0
    %620 = vmatprep.subr.mxu0 0.0
    %621 = vmatpush1.msra.mxu0 0.0
    %622 = vmatprep.subr.mxu0 0.0
    %623 = vmatpush1.msra.mxu0 0.0
    %624 = vmatprep.subr.mxu0 0.0
    %625 = vmatpush1.msra.mxu0 0.0
    %626 = vmatprep.subr.mxu0 0.0
    %627 = vmatpush1.msra.mxu0 0.0
    %628 = vmatprep.mubr.f32.mxu0 0.0
    %629 = vmatmul.mubr.f32.gmra.mrb[0].mxu0 %v492
    %v630 = vpop.f32.mrb[0].mxu0
    %v631 = vadd.f32 0.0, %v630
    %v632 = vpop.f32.mrb[0].mxu0
    %v633 = vadd.f32 0.0, %v632
    %634 = vdwg.mxu0
    %v635 = vadd.f32 %v631, %v455
    %v636 = vadd.f32 %v633, %v459
    %v637 = vtanh.pop %v635
    %v638 = vtanh.pop %v636
    %v639 = vmul.f32 %v637, %v289
    %v640 = vmul.f32 %v638, %v290
    %v641 = vadd.f32 %v639, %v291
    %v642 = vadd.f32 %v640, %v292
    %v643 = vsel %vm275, %v642, %v474
    %v644 = vmul.f32 %v641, %v643
    %645 = vrot.lane.b32.xlu0 %v644, 64
    %v646 = vpop.permute.xlu0 %645
    %v647 = vadd.f32 %v644, %v646
    %v648 = vtanh.pop %v647
    %v649 = vmul.f32 %v642, %v648
    %v650 = vadd.f32 %v174, %v560
    %v651 = vadd.f32 %v176, %v562
    %v652 = vtanh.pop %v650
    %v653 = vtanh.pop %v651
    %v654 = vmul.f32 %v652, %v279
    %v655 = vmul.f32 %v653, %v280
    %v656 = vadd.f32 %v654, %v281
    %v657 = vadd.f32 %v655, %v282
    %v658 = vsel %vm275, %v489, %v657
    %v659 = vmul.f32 %v656, %v658
    %660 = vrot.lane.b32.xlu0 %v659, 64
    %v661 = vpop.permute.xlu0 %660
    %v662 = vadd.f32 %v659, %v661
    %v663 = vtanh.pop %v662
    %v664 = vmul.f32 %v657, %v663
    %v665 = vsel %vm275, %v664, %v649
    %666 = vmatprep.subr.mxu0 %v209
    %667 = vmatpush1.msra.mxu0 %v208
    %668 = vmatprep.subr.mxu0 %v213
    %669 = vmatpush1.msra.mxu0 %v212
    %670 = vmatprep.subr.mxu0 %v217
    %671 = vmatpush1.msra.mxu0 %v216
    %672 = vmatprep.subr.mxu0 %v221
    %673 = vmatpush1.msra.mxu0 %v220
    %674 = vmatprep.subr.mxu0 %v225
    %675 = vmatpush1.msra.mxu0 %v224
    %676 = vmatprep.subr.mxu0 %v229
    %677 = vmatpush1.msra.mxu0 %v228
    %678 = vmatprep.subr.mxu0 %v233
    %679 = vmatpush1.msra.mxu0 %v232
    %680 = vmatprep.subr.mxu0 %v237
    %681 = vmatpush1.msra.mxu0 %v236
    %682 = vmatprep.subr.mxu0 %v241
    %683 = vmatpush1.msra.mxu0 %v240
    %684 = vmatprep.subr.mxu0 %v245
    %685 = vmatpush1.msra.mxu0 %v244
    %686 = vmatprep.subr.mxu0 %v249
    %687 = vmatpush1.msra.mxu0 %v248
    %688 = vmatprep.subr.mxu0 %v253
    %689 = vmatpush1.msra.mxu0 %v252
    %690 = vmatprep.subr.mxu0 %v257
    %691 = vmatpush1.msra.mxu0 %v256
    %692 = vmatprep.subr.mxu0 %v261
    %693 = vmatpush1.msra.mxu0 %v260
    %694 = vmatprep.subr.mxu0 %v265
    %695 = vmatpush1.msra.mxu0 %v264
    %696 = vmatprep.subr.mxu0 %v269
    %697 = vmatpush1.msra.mxu0 %v268
    %698 = vmatprep.subr.mxu0 0.0
    %699 = vmatpush1.msra.mxu0 0.0
    %700 = vmatprep.subr.mxu0 0.0
    %701 = vmatpush1.msra.mxu0 0.0
    %702 = vmatprep.subr.mxu0 0.0
    %703 = vmatpush1.msra.mxu0 0.0
    %704 = vmatprep.subr.mxu0 0.0
    %705 = vmatpush1.msra.mxu0 0.0
    %706 = vmatprep.subr.mxu0 0.0
    %707 = vmatpush1.msra.mxu0 0.0
    %708 = vmatprep.subr.mxu0 0.0
    %709 = vmatpush1.msra.mxu0 0.0
    %710 = vmatprep.subr.mxu0 0.0
    %711 = vmatpush1.msra.mxu0 0.0
    %712 = vmatprep.subr.mxu0 0.0
    %713 = vmatpush1.msra.mxu0 0.0
    %714 = vmatprep.subr.mxu0 0.0
    %715 = vmatpush1.msra.mxu0 0.0
    %716 = vmatprep.subr.mxu0 0.0
    %717 = vmatpush1.msra.mxu0 0.0
    %718 = vmatprep.subr.mxu0 0.0
    %719 = vmatpush1.msra.mxu0 0.0
    %720 = vmatprep.subr.mxu0 0.0
    %721 = vmatpush1.msra.mxu0 0.0
    %722 = vmatprep.subr.mxu0 0.0
    %723 = vmatpush1.msra.mxu0 0.0
    %724 = vmatprep.subr.mxu0 0.0
    %725 = vmatpush1.msra.mxu0 0.0
    %726 = vmatprep.subr.mxu0 0.0
    %727 = vmatpush1.msra.mxu0 0.0
    %728 = vmatprep.subr.mxu0 0.0
    %729 = vmatpush1.msra.mxu0 0.0
    %730 = vmatprep.mubr.f32.mxu0 0.0
    %731 = vmatmul.mubr.f32.gmra.mrb[0].mxu0 %v665
    %v732 = vpop.f32.mrb[0].mxu0
    %v733 = vadd.f32 0.0, %v732
    %v734 = vpop.f32.mrb[0].mxu0
    %v735 = vadd.f32 0.0, %v734
    %736 = vdwg.mxu0
    %737 = vmatprep.subr.mxu0 %v211
    %738 = vmatpush1.msra.mxu0 %v210
    %739 = vmatprep.subr.mxu0 %v215
    %740 = vmatpush1.msra.mxu0 %v214
    %741 = vmatprep.subr.mxu0 %v219
    %742 = vmatpush1.msra.mxu0 %v218
    %743 = vmatprep.subr.mxu0 %v223
    %744 = vmatpush1.msra.mxu0 %v222
    %745 = vmatprep.subr.mxu0 %v227
    %746 = vmatpush1.msra.mxu0 %v226
    %747 = vmatprep.subr.mxu0 %v231
    %748 = vmatpush1.msra.mxu0 %v230
    %749 = vmatprep.subr.mxu0 %v235
    %750 = vmatpush1.msra.mxu0 %v234
    %751 = vmatprep.subr.mxu0 %v239
    %752 = vmatpush1.msra.mxu0 %v238
    %753 = vmatprep.subr.mxu0 %v243
    %754 = vmatpush1.msra.mxu0 %v242
    %755 = vmatprep.subr.mxu0 %v247
    %756 = vmatpush1.msra.mxu0 %v246
    %757 = vmatprep.subr.mxu0 %v251
    %758 = vmatpush1.msra.mxu0 %v250
    %759 = vmatprep.subr.mxu0 %v255
    %760 = vmatpush1.msra.mxu0 %v254
    %761 = vmatprep.subr.mxu0 %v259
    %762 = vmatpush1.msra.mxu0 %v258
    %763 = vmatprep.subr.mxu0 %v263
    %764 = vmatpush1.msra.mxu0 %v262
    %765 = vmatprep.subr.mxu0 %v267
    %766 = vmatpush1.msra.mxu0 %v266
    %767 = vmatprep.subr.mxu0 %v271
    %768 = vmatpush1.msra.mxu0 %v270
    %769 = vmatprep.subr.mxu0 0.0
    %770 = vmatpush1.msra.mxu0 0.0
    %771 = vmatprep.subr.mxu0 0.0
    %772 = vmatpush1.msra.mxu0 0.0
    %773 = vmatprep.subr.mxu0 0.0
    %774 = vmatpush1.msra.mxu0 0.0
    %775 = vmatprep.subr.mxu0 0.0
    %776 = vmatpush1.msra.mxu0 0.0
    %777 = vmatprep.subr.mxu0 0.0
    %778 = vmatpush1.msra.mxu0 0.0
    %779 = vmatprep.subr.mxu0 0.0
    %780 = vmatpush1.msra.mxu0 0.0
    %781 = vmatprep.subr.mxu0 0.0
    %782 = vmatpush1.msra.mxu0 0.0
    %783 = vmatprep.subr.mxu0 0.0
    %784 = vmatpush1.msra.mxu0 0.0
    %785 = vmatprep.subr.mxu0 0.0
    %786 = vmatpush1.msra.mxu0 0.0
    %787 = vmatprep.subr.mxu0 0.0
    %788 = vmatpush1.msra.mxu0 0.0
    %789 = vmatprep.subr.mxu0 0.0
    %790 = vmatpush1.msra.mxu0 0.0
    %791 = vmatprep.subr.mxu0 0.0
    %792 = vmatpush1.msra.mxu0 0.0
    %793 = vmatprep.subr.mxu0 0.0
    %794 = vmatpush1.msra.mxu0 0.0
    %795 = vmatprep.subr.mxu0 0.0
    %796 = vmatpush1.msra.mxu0 0.0
    %797 = vmatprep.subr.mxu0 0.0
    %798 = vmatpush1.msra.mxu0 0.0
    %799 = vmatprep.subr.mxu0 0.0
    %800 = vmatpush1.msra.mxu0 0.0
    %801 = vmatprep.mubr.f32.mxu0 0.0
    %802 = vmatmul.mubr.f32.gmra.mrb[0].mxu0 %v665
    %v803 = vpop.f32.mrb[0].mxu0
    %v804 = vadd.f32 0.0, %v803
    %v805 = vpop.f32.mrb[0].mxu0
    %v806 = vadd.f32 0.0, %v805
    %807 = vdwg.mxu0
    %v808 = vadd.f32 %v804, %v455
    %v809 = vadd.f32 %v806, %v459
    %v810 = vtanh.pop %v808
    %v811 = vtanh.pop %v809
    %v812 = vmul.f32 %v810, %v289
    %v813 = vmul.f32 %v811, %v290
    %v814 = vadd.f32 %v812, %v291
    %v815 = vadd.f32 %v813, %v292
    %v816 = vsel %vm275, %v815, %v647
    %v817 = vmul.f32 %v814, %v816
    %818 = vrot.lane.b32.xlu0 %v817, 64
    %v819 = vpop.permute.xlu0 %818
    %v820 = vadd.f32 %v817, %v819
    %v821 = vtanh.pop %v820
    %v822 = vmul.f32 %v815, %v821
    %v823 = vadd.f32 %v180, %v733
    %v824 = vadd.f32 %v182, %v735
    %v825 = vtanh.pop %v823
    %v826 = vtanh.pop %v824
    %v827 = vmul.f32 %v825, %v279
    %v828 = vmul.f32 %v826, %v280
    %v829 = vadd.f32 %v827, %v281
    %v830 = vadd.f32 %v828, %v282
    %v831 = vsel %vm275, %v662, %v830
    %v832 = vmul.f32 %v829, %v831
    %833 = vrot.lane.b32.xlu0 %v832, 64
    %v834 = vpop.permute.xlu0 %833
    %v835 = vadd.f32 %v832, %v834
    %v836 = vtanh.pop %v835
    %v837 = vmul.f32 %v830, %v836
    %v838 = vsel %vm275, %v837, %v822
    %839 = vmatprep.subr.mxu0 %v209
    %840 = vmatpush1.msra.mxu0 %v208
    %841 = vmatprep.subr.mxu0 %v213
    %842 = vmatpush1.msra.mxu0 %v212
    %843 = vmatprep.subr.mxu0 %v217
    %844 = vmatpush1.msra.mxu0 %v216
    %845 = vmatprep.subr.mxu0 %v221
    %846 = vmatpush1.msra.mxu0 %v220
    %847 = vmatprep.subr.mxu0 %v225
    %848 = vmatpush1.msra.mxu0 %v224
    %849 = vmatprep.subr.mxu0 %v229
    %850 = vmatpush1.msra.mxu0 %v228
    %851 = vmatprep.subr.mxu0 %v233
    %852 = vmatpush1.msra.mxu0 %v232
    %853 = vmatprep.subr.mxu0 %v237
    %854 = vmatpush1.msra.mxu0 %v236
    %855 = vmatprep.subr.mxu0 %v241
    %856 = vmatpush1.msra.mxu0 %v240
    %857 = vmatprep.subr.mxu0 %v245
    %858 = vmatpush1.msra.mxu0 %v244
    %859 = vmatprep.subr.mxu0 %v249
    %860 = vmatpush1.msra.mxu0 %v248
    %861 = vmatprep.subr.mxu0 %v253
    %862 = vmatpush1.msra.mxu0 %v252
    %863 = vmatprep.subr.mxu0 %v257
    %864 = vmatpush1.msra.mxu0 %v256
    %865 = vmatprep.subr.mxu0 %v261
    %866 = vmatpush1.msra.mxu0 %v260
    %867 = vmatprep.subr.mxu0 %v265
    %868 = vmatpush1.msra.mxu0 %v264
    %869 = vmatprep.subr.mxu0 %v269
    %870 = vmatpush1.msra.mxu0 %v268
    %871 = vmatprep.subr.mxu0 0.0
    %872 = vmatpush1.msra.mxu0 0.0
    %873 = vmatprep.subr.mxu0 0.0
    %874 = vmatpush1.msra.mxu0 0.0
    %875 = vmatprep.subr.mxu0 0.0
    %876 = vmatpush1.msra.mxu0 0.0
    %877 = vmatprep.subr.mxu0 0.0
    %878 = vmatpush1.msra.mxu0 0.0
    %879 = vmatprep.subr.mxu0 0.0
    %880 = vmatpush1.msra.mxu0 0.0
    %881 = vmatprep.subr.mxu0 0.0
    %882 = vmatpush1.msra.mxu0 0.0
    %883 = vmatprep.subr.mxu0 0.0
    %884 = vmatpush1.msra.mxu0 0.0
    %885 = vmatprep.subr.mxu0 0.0
    %886 = vmatpush1.msra.mxu0 0.0
    %887 = vmatprep.subr.mxu0 0.0
    %888 = vmatpush1.msra.mxu0 0.0
    %889 = vmatprep.subr.mxu0 0.0
    %890 = vmatpush1.msra.mxu0 0.0
    %891 = vmatprep.subr.mxu0 0.0
    %892 = vmatpush1.msra.mxu0 0.0
    %893 = vmatprep.subr.mxu0 0.0
    %894 = vmatpush1.msra.mxu0 0.0
    %895 = vmatprep.subr.mxu0 0.0
    %896 = vmatpush1.msra.mxu0 0.0
    %897 = vmatprep.subr.mxu0 0.0
    %898 = vmatpush1.msra.mxu0 0.0
    %899 = vmatprep.subr.mxu0 0.0
    %900 = vmatpush1.msra.mxu0 0.0
    %901 = vmatprep.subr.mxu0 0.0
    %902 = vmatpush1.msra.mxu0 0.0
    %903 = vmatprep.mubr.f32.mxu0 0.0
    %904 = vmatmul.mubr.f32.gmra.mrb[0].mxu0 %v838
    %v905 = vpop.f32.mrb[0].mxu0
    %v906 = vadd.f32 0.0, %v905
    %v907 = vpop.f32.mrb[0].mxu0
    %v908 = vadd.f32 0.0, %v907
    %909 = vdwg.mxu0
    %910 = vmatprep.subr.mxu0 %v211
    %911 = vmatpush1.msra.mxu0 %v210
    %912 = vmatprep.subr.mxu0 %v215
    %913 = vmatpush1.msra.mxu0 %v214
    %914 = vmatprep.subr.mxu0 %v219
    %915 = vmatpush1.msra.mxu0 %v218
    %916 = vmatprep.subr.mxu0 %v223
    %917 = vmatpush1.msra.mxu0 %v222
    %918 = vmatprep.subr.mxu0 %v227
    %919 = vmatpush1.msra.mxu0 %v226
    %920 = vmatprep.subr.mxu0 %v231
    %921 = vmatpush1.msra.mxu0 %v230
    %922 = vmatprep.subr.mxu0 %v235
    %923 = vmatpush1.msra.mxu0 %v234
    %924 = vmatprep.subr.mxu0 %v239
    %925 = vmatpush1.msra.mxu0 %v238
    %926 = vmatprep.subr.mxu0 %v243
    %927 = vmatpush1.msra.mxu0 %v242
    %928 = vmatprep.subr.mxu0 %v247
    %929 = vmatpush1.msra.mxu0 %v246
    %930 = vmatprep.subr.mxu0 %v251
    %931 = vmatpush1.msra.mxu0 %v250
    %932 = vmatprep.subr.mxu0 %v255
    %933 = vmatpush1.msra.mxu0 %v254
    %934 = vmatprep.subr.mxu0 %v259
    %935 = vmatpush1.msra.mxu0 %v258
    %936 = vmatprep.subr.mxu0 %v263
    %937 = vmatpush1.msra.mxu0 %v262
    %938 = vmatprep.subr.mxu0 %v267
    %939 = vmatpush1.msra.mxu0 %v266
    %940 = vmatprep.subr.mxu0 %v271
    %941 = vmatpush1.msra.mxu0 %v270
    %942 = vmatprep.subr.mxu0 0.0
    %943 = vmatpush1.msra.mxu0 0.0
    %944 = vmatprep.subr.mxu0 0.0
    %945 = vmatpush1.msra.mxu0 0.0
    %946 = vmatprep.subr.mxu0 0.0
    %947 = vmatpush1.msra.mxu0 0.0
    %948 = vmatprep.subr.mxu0 0.0
    %949 = vmatpush1.msra.mxu0 0.0
    %950 = vmatprep.subr.mxu0 0.0
    %951 = vmatpush1.msra.mxu0 0.0
    %952 = vmatprep.subr.mxu0 0.0
    %953 = vmatpush1.msra.mxu0 0.0
    %954 = vmatprep.subr.mxu0 0.0
    %955 = vmatpush1.msra.mxu0 0.0
    %956 = vmatprep.subr.mxu0 0.0
    %957 = vmatpush1.msra.mxu0 0.0
    %958 = vmatprep.subr.mxu0 0.0
    %959 = vmatpush1.msra.mxu0 0.0
    %960 = vmatprep.subr.mxu0 0.0
    %961 = vmatpush1.msra.mxu0 0.0
    %962 = vmatprep.subr.mxu0 0.0
    %963 = vmatpush1.msra.mxu0 0.0
    %964 = vmatprep.subr.mxu0 0.0
    %965 = vmatpush1.msra.mxu0 0.0
    %966 = vmatprep.subr.mxu0 0.0
    %967 = vmatpush1.msra.mxu0 0.0
    %968 = vmatprep.subr.mxu0 0.0
    %969 = vmatpush1.msra.mxu0 0.0
    %970 = vmatprep.subr.mxu0 0.0
    %971 = vmatpush1.msra.mxu0 0.0
    %972 = vmatprep.subr.mxu0 0.0
    %973 = vmatpush1.msra.mxu0 0.0
    %974 = vmatprep.mubr.f32.mxu0 0.0
    %975 = vmatmul.mubr.f32.gmra.mrb[0].mxu0 %v838
    %v976 = vpop.f32.mrb[0].mxu0
    %v977 = vadd.f32 0.0, %v976
    %v978 = vpop.f32.mrb[0].mxu0
    %v979 = vadd.f32 0.0, %v978
    %980 = vdwg.mxu0
    %v981 = vadd.f32 %v977, %v455
    %v982 = vadd.f32 %v979, %v459
    %v983 = vtanh.pop %v981
    %v984 = vtanh.pop %v982
    %v985 = vmul.f32 %v983, %v289
    %v986 = vmul.f32 %v984, %v290
    %v987 = vadd.f32 %v985, %v291
    %v988 = vadd.f32 %v986, %v292
    %v989 = vsel %vm275, %v988, %v820
    %v990 = vmul.f32 %v987, %v989
    %991 = vrot.lane.b32.xlu0 %v990, 64
    %v992 = vpop.permute.xlu0 %991
    %v993 = vadd.f32 %v990, %v992
    %v994 = vtanh.pop %v993
    %v995 = vmul.f32 %v988, %v994
    %v996 = vadd.f32 %v186, %v906
    %v997 = vadd.f32 %v188, %v908
    %v998 = vtanh.pop %v996
    %v999 = vtanh.pop %v997
    %v1000 = vmul.f32 %v998, %v279
    %v1001 = vmul.f32 %v999, %v280
    %v1002 = vadd.f32 %v1000, %v281
    %v1003 = vadd.f32 %v1001, %v282
    %v1004 = vsel %vm275, %v835, %v1003
    %v1005 = vmul.f32 %v1002, %v1004
    %1006 = vrot.lane.b32.xlu0 %v1005, 64
    %v1007 = vpop.permute.xlu0 %1006
    %v1008 = vadd.f32 %v1005, %v1007
    %v1009 = vtanh.pop %v1008
    %v1010 = vmul.f32 %v1003, %v1009
    %v1011 = vsel %vm275, %v1010, %v995
    %1012 = vmatprep.subr.mxu0 %v209
    %1013 = vmatpush1.msra.mxu0 %v208
    %1014 = vmatprep.subr.mxu0 %v213
    %1015 = vmatpush1.msra.mxu0 %v212
    %1016 = vmatprep.subr.mxu0 %v217
    %1017 = vmatpush1.msra.mxu0 %v216
    %1018 = vmatprep.subr.mxu0 %v221
    %1019 = vmatpush1.msra.mxu0 %v220
    %1020 = vmatprep.subr.mxu0 %v225
    %1021 = vmatpush1.msra.mxu0 %v224
    %1022 = vmatprep.subr.mxu0 %v229
    %1023 = vmatpush1.msra.mxu0 %v228
    %1024 = vmatprep.subr.mxu0 %v233
    %1025 = vmatpush1.msra.mxu0 %v232
    %1026 = vmatprep.subr.mxu0 %v237
    %1027 = vmatpush1.msra.mxu0 %v236
    %1028 = vmatprep.subr.mxu0 %v241
    %1029 = vmatpush1.msra.mxu0 %v240
    %1030 = vmatprep.subr.mxu0 %v245
    %1031 = vmatpush1.msra.mxu0 %v244
    %1032 = vmatprep.subr.mxu0 %v249
    %1033 = vmatpush1.msra.mxu0 %v248
    %1034 = vmatprep.subr.mxu0 %v253
    %1035 = vmatpush1.msra.mxu0 %v252
    %1036 = vmatprep.subr.mxu0 %v257
    %1037 = vmatpush1.msra.mxu0 %v256
    %1038 = vmatprep.subr.mxu0 %v261
    %1039 = vmatpush1.msra.mxu0 %v260
    %1040 = vmatprep.subr.mxu0 %v265
    %1041 = vmatpush1.msra.mxu0 %v264
    %1042 = vmatprep.subr.mxu0 %v269
    %1043 = vmatpush1.msra.mxu0 %v268
    %1044 = vmatprep.subr.mxu0 0.0
    %1045 = vmatpush1.msra.mxu0 0.0
    %1046 = vmatprep.subr.mxu0 0.0
    %1047 = vmatpush1.msra.mxu0 0.0
    %1048 = vmatprep.subr.mxu0 0.0
    %1049 = vmatpush1.msra.mxu0 0.0
    %1050 = vmatprep.subr.mxu0 0.0
    %1051 = vmatpush1.msra.mxu0 0.0
    %1052 = vmatprep.subr.mxu0 0.0
    %1053 = vmatpush1.msra.mxu0 0.0
    %1054 = vmatprep.subr.mxu0 0.0
    %1055 = vmatpush1.msra.mxu0 0.0
    %1056 = vmatprep.subr.mxu0 0.0
    %1057 = vmatpush1.msra.mxu0 0.0
    %1058 = vmatprep.subr.mxu0 0.0
    %1059 = vmatpush1.msra.mxu0 0.0
    %1060 = vmatprep.subr.mxu0 0.0
    %1061 = vmatpush1.msra.mxu0 0.0
    %1062 = vmatprep.subr.mxu0 0.0
    %1063 = vmatpush1.msra.mxu0 0.0
    %1064 = vmatprep.subr.mxu0 0.0
    %1065 = vmatpush1.msra.mxu0 0.0
    %1066 = vmatprep.subr.mxu0 0.0
    %1067 = vmatpush1.msra.mxu0 0.0
    %1068 = vmatprep.subr.mxu0 0.0
    %1069 = vmatpush1.msra.mxu0 0.0
    %1070 = vmatprep.subr.mxu0 0.0
    %1071 = vmatpush1.msra.mxu0 0.0
    %1072 = vmatprep.subr.mxu0 0.0
    %1073 = vmatpush1.msra.mxu0 0.0
    %1074 = vmatprep.subr.mxu0 0.0
    %1075 = vmatpush1.msra.mxu0 0.0
    %1076 = vmatprep.mubr.f32.mxu0 0.0
    %1077 = vmatmul.mubr.f32.gmra.mrb[0].mxu0 %v1011
    %v1078 = vpop.f32.mrb[0].mxu0
    %v1079 = vadd.f32 0.0, %v1078
    %v1080 = vpop.f32.mrb[0].mxu0
    %v1081 = vadd.f32 0.0, %v1080
    %1082 = vdwg.mxu0
    %1083 = vmatprep.subr.mxu0 %v211
    %1084 = vmatpush1.msra.mxu0 %v210
    %1085 = vmatprep.subr.mxu0 %v215
    %1086 = vmatpush1.msra.mxu0 %v214
    %1087 = vmatprep.subr.mxu0 %v219
    %1088 = vmatpush1.msra.mxu0 %v218
    %1089 = vmatprep.subr.mxu0 %v223
    %1090 = vmatpush1.msra.mxu0 %v222
    %1091 = vmatprep.subr.mxu0 %v227
    %1092 = vmatpush1.msra.mxu0 %v226
    %1093 = vmatprep.subr.mxu0 %v231
    %1094 = vmatpush1.msra.mxu0 %v230
    %1095 = vmatprep.subr.mxu0 %v235
    %1096 = vmatpush1.msra.mxu0 %v234
    %1097 = vmatprep.subr.mxu0 %v239
    %1098 = vmatpush1.msra.mxu0 %v238
    %1099 = vmatprep.subr.mxu0 %v243
    %1100 = vmatpush1.msra.mxu0 %v242
    %1101 = vmatprep.subr.mxu0 %v247
    %1102 = vmatpush1.msra.mxu0 %v246
    %1103 = vmatprep.subr.mxu0 %v251
    %1104 = vmatpush1.msra.mxu0 %v250
    %1105 = vmatprep.subr.mxu0 %v255
    %1106 = vmatpush1.msra.mxu0 %v254
    %1107 = vmatprep.subr.mxu0 %v259
    %1108 = vmatpush1.msra.mxu0 %v258
    %1109 = vmatprep.subr.mxu0 %v263
    %1110 = vmatpush1.msra.mxu0 %v262
    %1111 = vmatprep.subr.mxu0 %v267
    %1112 = vmatpush1.msra.mxu0 %v266
    %1113 = vmatprep.subr.mxu0 %v271
    %1114 = vmatpush1.msra.mxu0 %v270
    %1115 = vmatprep.subr.mxu0 0.0
    %1116 = vmatpush1.msra.mxu0 0.0
    %1117 = vmatprep.subr.mxu0 0.0
    %1118 = vmatpush1.msra.mxu0 0.0
    %1119 = vmatprep.subr.mxu0 0.0
    %1120 = vmatpush1.msra.mxu0 0.0
    %1121 = vmatprep.subr.mxu0 0.0
    %1122 = vmatpush1.msra.mxu0 0.0
    %1123 = vmatprep.subr.mxu0 0.0
    %1124 = vmatpush1.msra.mxu0 0.0
    %1125 = vmatprep.subr.mxu0 0.0
    %1126 = vmatpush1.msra.mxu0 0.0
    %1127 = vmatprep.subr.mxu0 0.0
    %1128 = vmatpush1.msra.mxu0 0.0
    %1129 = vmatprep.subr.mxu0 0.0
    %1130 = vmatpush1.msra.mxu0 0.0
    %1131 = vmatprep.subr.mxu0 0.0
    %1132 = vmatpush1.msra.mxu0 0.0
    %1133 = vmatprep.subr.mxu0 0.0
    %1134 = vmatpush1.msra.mxu0 0.0
    %1135 = vmatprep.subr.mxu0 0.0
    %1136 = vmatpush1.msra.mxu0 0.0
    %1137 = vmatprep.subr.mxu0 0.0
    %1138 = vmatpush1.msra.mxu0 0.0
    %1139 = vmatprep.subr.mxu0 0.0
    %1140 = vmatpush1.msra.mxu0 0.0
    %1141 = vmatprep.subr.mxu0 0.0
    %1142 = vmatpush1.msra.mxu0 0.0
    %1143 = vmatprep.subr.mxu0 0.0
    %1144 = vmatpush1.msra.mxu0 0.0
    %1145 = vmatprep.subr.mxu0 0.0
    %1146 = vmatpush1.msra.mxu0 0.0
    %1147 = vmatprep.mubr.f32.mxu0 0.0
    %1148 = vmatmul.mubr.f32.gmra.mrb[0].mxu0 %v1011
    %v1149 = vpop.f32.mrb[0].mxu0
    %v1150 = vadd.f32 0.0, %v1149
    %v1151 = vpop.f32.mrb[0].mxu0
    %v1152 = vadd.f32 0.0, %v1151
    %1153 = vdwg.mxu0
    %v1154 = vadd.f32 %v1150, %v455
    %v1155 = vadd.f32 %v1152, %v459
    %v1156 = vtanh.pop %v1154
    %v1157 = vtanh.pop %v1155
    %v1158 = vmul.f32 %v1156, %v289
    %v1159 = vmul.f32 %v1157, %v290
    %v1160 = vadd.f32 %v1158, %v291
    %v1161 = vadd.f32 %v1159, %v292
    %v1162 = vsel %vm275, %v1161, %v993
    %v1163 = vmul.f32 %v1160, %v1162
    %1164 = vrot.lane.b32.xlu0 %v1163, 64
    %v1165 = vpop.permute.xlu0 %1164
    %v1166 = vadd.f32 %v1163, %v1165
    %v1167 = vtanh.pop %v1166
    %v1168 = vmul.f32 %v1161, %v1167
    %v1169 = vadd.f32 %v192, %v1079
    %v1170 = vadd.f32 %v194, %v1081
    %v1171 = vtanh.pop %v1169
    %v1172 = vtanh.pop %v1170
    %v1173 = vmul.f32 %v1171, %v279
    %v1174 = vmul.f32 %v1172, %v280
    %v1175 = vadd.f32 %v1173, %v281
    %v1176 = vadd.f32 %v1174, %v282
    %v1177 = vsel %vm275, %v1008, %v1176
    %v1178 = vmul.f32 %v1175, %v1177
    %1179 = vrot.lane.b32.xlu0 %v1178, 64
    %v1180 = vpop.permute.xlu0 %1179
    %v1181 = vadd.f32 %v1178, %v1180
    %v1182 = vtanh.pop %v1181
    %v1183 = vmul.f32 %v1176, %v1182
    %v1184 = vsel %vm275, %v1183, %v1168
    %1185 = vmatprep.subr.mxu0 %v209
    %1186 = vmatpush1.msra.mxu0 %v208
    %1187 = vmatprep.subr.mxu0 %v213
    %1188 = vmatpush1.msra.mxu0 %v212
    %1189 = vmatprep.subr.mxu0 %v217
    %1190 = vmatpush1.msra.mxu0 %v216
    %1191 = vmatprep.subr.mxu0 %v221
    %1192 = vmatpush1.msra.mxu0 %v220
    %1193 = vmatprep.subr.mxu0 %v225
    %1194 = vmatpush1.msra.mxu0 %v224
    %1195 = vmatprep.subr.mxu0 %v229
    %1196 = vmatpush1.msra.mxu0 %v228
    %1197 = vmatprep.subr.mxu0 %v233
    %1198 = vmatpush1.msra.mxu0 %v232
    %1199 = vmatprep.subr.mxu0 %v237
    %1200 = vmatpush1.msra.mxu0 %v236
    %1201 = vmatprep.subr.mxu0 %v241
    %1202 = vmatpush1.msra.mxu0 %v240
    %1203 = vmatprep.subr.mxu0 %v245
    %1204 = vmatpush1.msra.mxu0 %v244
    %1205 = vmatprep.subr.mxu0 %v249
    %1206 = vmatpush1.msra.mxu0 %v248
    %1207 = vmatprep.subr.mxu0 %v253
    %1208 = vmatpush1.msra.mxu0 %v252
    %1209 = vmatprep.subr.mxu0 %v257
    %1210 = vmatpush1.msra.mxu0 %v256
    %1211 = vmatprep.subr.mxu0 %v261
    %1212 = vmatpush1.msra.mxu0 %v260
    %1213 = vmatprep.subr.mxu0 %v265
    %1214 = vmatpush1.msra.mxu0 %v264
    %1215 = vmatprep.subr.mxu0 %v269
    %1216 = vmatpush1.msra.mxu0 %v268
    %1217 = vmatprep.subr.mxu0 0.0
    %1218 = vmatpush1.msra.mxu0 0.0
    %1219 = vmatprep.subr.mxu0 0.0
    %1220 = vmatpush1.msra.mxu0 0.0
    %1221 = vmatprep.subr.mxu0 0.0
    %1222 = vmatpush1.msra.mxu0 0.0
    %1223 = vmatprep.subr.mxu0 0.0
    %1224 = vmatpush1.msra.mxu0 0.0
    %1225 = vmatprep.subr.mxu0 0.0
    %1226 = vmatpush1.msra.mxu0 0.0
    %1227 = vmatprep.subr.mxu0 0.0
    %1228 = vmatpush1.msra.mxu0 0.0
    %1229 = vmatprep.subr.mxu0 0.0
    %1230 = vmatpush1.msra.mxu0 0.0
    %1231 = vmatprep.subr.mxu0 0.0
    %1232 = vmatpush1.msra.mxu0 0.0
    %1233 = vmatprep.subr.mxu0 0.0
    %1234 = vmatpush1.msra.mxu0 0.0
    %1235 = vmatprep.subr.mxu0 0.0
    %1236 = vmatpush1.msra.mxu0 0.0
    %1237 = vmatprep.subr.mxu0 0.0
    %1238 = vmatpush1.msra.mxu0 0.0
    %1239 = vmatprep.subr.mxu0 0.0
    %1240 = vmatpush1.msra.mxu0 0.0
    %1241 = vmatprep.subr.mxu0 0.0
    %1242 = vmatpush1.msra.mxu0 0.0
    %1243 = vmatprep.subr.mxu0 0.0
    %1244 = vmatpush1.msra.mxu0 0.0
    %1245 = vmatprep.subr.mxu0 0.0
    %1246 = vmatpush1.msra.mxu0 0.0
    %1247 = vmatprep.subr.mxu0 0.0
    %1248 = vmatpush1.msra.mxu0 0.0
    %1249 = vmatprep.mubr.f32.mxu0 0.0
    %1250 = vmatmul.mubr.f32.gmra.mrb[0].mxu0 %v1184
    %v1251 = vpop.f32.mrb[0].mxu0
    %v1252 = vadd.f32 0.0, %v1251
    %v1253 = vpop.f32.mrb[0].mxu0
    %v1254 = vadd.f32 0.0, %v1253
    %1255 = vdwg.mxu0
    %1256 = vmatprep.subr.mxu0 %v211
    %1257 = vmatpush1.msra.mxu0 %v210
    %1258 = vmatprep.subr.mxu0 %v215
    %1259 = vmatpush1.msra.mxu0 %v214
    %1260 = vmatprep.subr.mxu0 %v219
    %1261 = vmatpush1.msra.mxu0 %v218
    %1262 = vmatprep.subr.mxu0 %v223
    %1263 = vmatpush1.msra.mxu0 %v222
    %1264 = vmatprep.subr.mxu0 %v227
    %1265 = vmatpush1.msra.mxu0 %v226
    %1266 = vmatprep.subr.mxu0 %v231
    %1267 = vmatpush1.msra.mxu0 %v230
    %1268 = vmatprep.subr.mxu0 %v235
    %1269 = vmatpush1.msra.mxu0 %v234
    %1270 = vmatprep.subr.mxu0 %v239
    %1271 = vmatpush1.msra.mxu0 %v238
    %1272 = vmatprep.subr.mxu0 %v243
    %1273 = vmatpush1.msra.mxu0 %v242
    %1274 = vmatprep.subr.mxu0 %v247
    %1275 = vmatpush1.msra.mxu0 %v246
    %1276 = vmatprep.subr.mxu0 %v251
    %1277 = vmatpush1.msra.mxu0 %v250
    %1278 = vmatprep.subr.mxu0 %v255
    %1279 = vmatpush1.msra.mxu0 %v254
    %1280 = vmatprep.subr.mxu0 %v259
    %1281 = vmatpush1.msra.mxu0 %v258
    %1282 = vmatprep.subr.mxu0 %v263
    %1283 = vmatpush1.msra.mxu0 %v262
    %1284 = vmatprep.subr.mxu0 %v267
    %1285 = vmatpush1.msra.mxu0 %v266
    %1286 = vmatprep.subr.mxu0 %v271
    %1287 = vmatpush1.msra.mxu0 %v270
    %1288 = vmatprep.subr.mxu0 0.0
    %1289 = vmatpush1.msra.mxu0 0.0
    %1290 = vmatprep.subr.mxu0 0.0
    %1291 = vmatpush1.msra.mxu0 0.0
    %1292 = vmatprep.subr.mxu0 0.0
    %1293 = vmatpush1.msra.mxu0 0.0
    %1294 = vmatprep.subr.mxu0 0.0
    %1295 = vmatpush1.msra.mxu0 0.0
    %1296 = vmatprep.subr.mxu0 0.0
    %1297 = vmatpush1.msra.mxu0 0.0
    %1298 = vmatprep.subr.mxu0 0.0
    %1299 = vmatpush1.msra.mxu0 0.0
    %1300 = vmatprep.subr.mxu0 0.0
    %1301 = vmatpush1.msra.mxu0 0.0
    %1302 = vmatprep.subr.mxu0 0.0
    %1303 = vmatpush1.msra.mxu0 0.0
    %1304 = vmatprep.subr.mxu0 0.0
    %1305 = vmatpush1.msra.mxu0 0.0
    %1306 = vmatprep.subr.mxu0 0.0
    %1307 = vmatpush1.msra.mxu0 0.0
    %1308 = vmatprep.subr.mxu0 0.0
    %1309 = vmatpush1.msra.mxu0 0.0
    %1310 = vmatprep.subr.mxu0 0.0
    %1311 = vmatpush1.msra.mxu0 0.0
    %1312 = vmatprep.subr.mxu0 0.0
    %1313 = vmatpush1.msra.mxu0 0.0
    %1314 = vmatprep.subr.mxu0 0.0
    %1315 = vmatpush1.msra.mxu0 0.0
    %1316 = vmatprep.subr.mxu0 0.0
    %1317 = vmatpush1.msra.mxu0 0.0
    %1318 = vmatprep.subr.mxu0 0.0
    %1319 = vmatpush1.msra.mxu0 0.0
    %1320 = vmatprep.mubr.f32.mxu0 0.0
    %1321 = vmatmul.mubr.f32.gmra.mrb[0].mxu0 %v1184
    %v1322 = vpop.f32.mrb[0].mxu0
    %v1323 = vadd.f32 0.0, %v1322
    %v1324 = vpop.f32.mrb[0].mxu0
    %v1325 = vadd.f32 0.0, %v1324
    %1326 = vdwg.mxu0
    %v1327 = vadd.f32 %v1323, %v455
    %v1328 = vadd.f32 %v1325, %v459
    %v1329 = vtanh.pop %v1327
    %v1330 = vtanh.pop %v1328
    %v1331 = vmul.f32 %v1329, %v289
    %v1332 = vmul.f32 %v1330, %v290
    %v1333 = vadd.f32 %v1331, %v291
    %v1334 = vadd.f32 %v1332, %v292
    %v1335 = vsel %vm275, %v1334, %v1166
    %v1336 = vmul.f32 %v1333, %v1335
    %1337 = vrot.lane.b32.xlu0 %v1336, 64
    %v1338 = vpop.permute.xlu0 %1337
    %v1339 = vadd.f32 %v1336, %v1338
    %v1340 = vtanh.pop %v1339
    %v1341 = vmul.f32 %v1334, %v1340
    %v1342 = vadd.f32 %v198, %v1252
    %v1343 = vadd.f32 %v200, %v1254
    %v1344 = vtanh.pop %v1342
    %v1345 = vtanh.pop %v1343
    %v1346 = vmul.f32 %v1344, %v279
    %v1347 = vmul.f32 %v1345, %v280
    %v1348 = vadd.f32 %v1346, %v281
    %v1349 = vadd.f32 %v1347, %v282
    %v1350 = vsel %vm275, %v1181, %v1349
    %v1351 = vmul.f32 %v1348, %v1350
    %1352 = vrot.lane.b32.xlu0 %v1351, 64
    %v1353 = vpop.permute.xlu0 %1352
    %v1354 = vadd.f32 %v1351, %v1353
    %v1355 = vtanh.pop %v1354
    %v1356 = vmul.f32 %v1349, %v1355
    %v1357 = vsel %vm275, %v1356, %v1341
    %1358 = vmatprep.subr.mxu0 %v209
    %1359 = vmatpush1.msra.mxu0 %v208
    %1360 = vmatprep.subr.mxu0 %v213
    %1361 = vmatpush1.msra.mxu0 %v212
    %1362 = vmatprep.subr.mxu0 %v217
    %1363 = vmatpush1.msra.mxu0 %v216
    %1364 = vmatprep.subr.mxu0 %v221
    %1365 = vmatpush1.msra.mxu0 %v220
    %1366 = vmatprep.subr.mxu0 %v225
    %1367 = vmatpush1.msra.mxu0 %v224
    %1368 = vmatprep.subr.mxu0 %v229
    %1369 = vmatpush1.msra.mxu0 %v228
    %1370 = vmatprep.subr.mxu0 %v233
    %1371 = vmatpush1.msra.mxu0 %v232
    %1372 = vmatprep.subr.mxu0 %v237
    %1373 = vmatpush1.msra.mxu0 %v236
    %1374 = vmatprep.subr.mxu0 %v241
    %1375 = vmatpush1.msra.mxu0 %v240
    %1376 = vmatprep.subr.mxu0 %v245
    %1377 = vmatpush1.msra.mxu0 %v244
    %1378 = vmatprep.subr.mxu0 %v249
    %1379 = vmatpush1.msra.mxu0 %v248
    %1380 = vmatprep.subr.mxu0 %v253
    %1381 = vmatpush1.msra.mxu0 %v252
    %1382 = vmatprep.subr.mxu0 %v257
    %1383 = vmatpush1.msra.mxu0 %v256
    %1384 = vmatprep.subr.mxu0 %v261
    %1385 = vmatpush1.msra.mxu0 %v260
    %1386 = vmatprep.subr.mxu0 %v265
    %1387 = vmatpush1.msra.mxu0 %v264
    %1388 = vmatprep.subr.mxu0 %v269
    %1389 = vmatpush1.msra.mxu0 %v268
    %1390 = vmatprep.subr.mxu0 0.0
    %1391 = vmatpush1.msra.mxu0 0.0
    %1392 = vmatprep.subr.mxu0 0.0
    %1393 = vmatpush1.msra.mxu0 0.0
    %1394 = vmatprep.subr.mxu0 0.0
    %1395 = vmatpush1.msra.mxu0 0.0
    %1396 = vmatprep.subr.mxu0 0.0
    %1397 = vmatpush1.msra.mxu0 0.0
    %1398 = vmatprep.subr.mxu0 0.0
    %1399 = vmatpush1.msra.mxu0 0.0
    %1400 = vmatprep.subr.mxu0 0.0
    %1401 = vmatpush1.msra.mxu0 0.0
    %1402 = vmatprep.subr.mxu0 0.0
    %1403 = vmatpush1.msra.mxu0 0.0
    %1404 = vmatprep.subr.mxu0 0.0
    %1405 = vmatpush1.msra.mxu0 0.0
    %1406 = vmatprep.subr.mxu0 0.0
    %1407 = vmatpush1.msra.mxu0 0.0
    %1408 = vmatprep.subr.mxu0 0.0
    %1409 = vmatpush1.msra.mxu0 0.0
    %1410 = vmatprep.subr.mxu0 0.0
    %1411 = vmatpush1.msra.mxu0 0.0
    %1412 = vmatprep.subr.mxu0 0.0
    %1413 = vmatpush1.msra.mxu0 0.0
    %1414 = vmatprep.subr.mxu0 0.0
    %1415 = vmatpush1.msra.mxu0 0.0
    %1416 = vmatprep.subr.mxu0 0.0
    %1417 = vmatpush1.msra.mxu0 0.0
    %1418 = vmatprep.subr.mxu0 0.0
    %1419 = vmatpush1.msra.mxu0 0.0
    %1420 = vmatprep.subr.mxu0 0.0
    %1421 = vmatpush1.msra.mxu0 0.0
    %1422 = vmatprep.mubr.f32.mxu0 0.0
    %1423 = vmatmul.mubr.f32.gmra.mrb[0].mxu0 %v1357
    %v1424 = vpop.f32.mrb[0].mxu0
    %v1425 = vadd.f32 0.0, %v1424
    %v1426 = vpop.f32.mrb[0].mxu0
    %v1427 = vadd.f32 0.0, %v1426
    %1428 = vdwg.mxu0
    %1429 = vmatprep.subr.mxu0 %v211
    %1430 = vmatpush1.msra.mxu0 %v210
    %1431 = vmatprep.subr.mxu0 %v215
    %1432 = vmatpush1.msra.mxu0 %v214
    %1433 = vmatprep.subr.mxu0 %v219
    %1434 = vmatpush1.msra.mxu0 %v218
    %1435 = vmatprep.subr.mxu0 %v223
    %1436 = vmatpush1.msra.mxu0 %v222
    %1437 = vmatprep.subr.mxu0 %v227
    %1438 = vmatpush1.msra.mxu0 %v226
    %1439 = vmatprep.subr.mxu0 %v231
    %1440 = vmatpush1.msra.mxu0 %v230
    %1441 = vmatprep.subr.mxu0 %v235
    %1442 = vmatpush1.msra.mxu0 %v234
    %1443 = vmatprep.subr.mxu0 %v239
    %1444 = vmatpush1.msra.mxu0 %v238
    %1445 = vmatprep.subr.mxu0 %v243
    %1446 = vmatpush1.msra.mxu0 %v242
    %1447 = vmatprep.subr.mxu0 %v247
    %1448 = vmatpush1.msra.mxu0 %v246
    %1449 = vmatprep.subr.mxu0 %v251
    %1450 = vmatpush1.msra.mxu0 %v250
    %1451 = vmatprep.subr.mxu0 %v255
    %1452 = vmatpush1.msra.mxu0 %v254
    %1453 = vmatprep.subr.mxu0 %v259
    %1454 = vmatpush1.msra.mxu0 %v258
    %1455 = vmatprep.subr.mxu0 %v263
    %1456 = vmatpush1.msra.mxu0 %v262
    %1457 = vmatprep.subr.mxu0 %v267
    %1458 = vmatpush1.msra.mxu0 %v266
    %1459 = vmatprep.subr.mxu0 %v271
    %1460 = vmatpush1.msra.mxu0 %v270
    %1461 = vmatprep.subr.mxu0 0.0
    %1462 = vmatpush1.msra.mxu0 0.0
    %1463 = vmatprep.subr.mxu0 0.0
    %1464 = vmatpush1.msra.mxu0 0.0
    %1465 = vmatprep.subr.mxu0 0.0
    %1466 = vmatpush1.msra.mxu0 0.0
    %1467 = vmatprep.subr.mxu0 0.0
    %1468 = vmatpush1.msra.mxu0 0.0
    %1469 = vmatprep.subr.mxu0 0.0
    %1470 = vmatpush1.msra.mxu0 0.0
    %1471 = vmatprep.subr.mxu0 0.0
    %1472 = vmatpush1.msra.mxu0 0.0
    %1473 = vmatprep.subr.mxu0 0.0
    %1474 = vmatpush1.msra.mxu0 0.0
    %1475 = vmatprep.subr.mxu0 0.0
    %1476 = vmatpush1.msra.mxu0 0.0
    %1477 = vmatprep.subr.mxu0 0.0
    %1478 = vmatpush1.msra.mxu0 0.0
    %1479 = vmatprep.subr.mxu0 0.0
    %1480 = vmatpush1.msra.mxu0 0.0
    %1481 = vmatprep.subr.mxu0 0.0
    %1482 = vmatpush1.msra.mxu0 0.0
    %1483 = vmatprep.subr.mxu0 0.0
    %1484 = vmatpush1.msra.mxu0 0.0
    %1485 = vmatprep.subr.mxu0 0.0
    %1486 = vmatpush1.msra.mxu0 0.0
    %1487 = vmatprep.subr.mxu0 0.0
    %1488 = vmatpush1.msra.mxu0 0.0
    %1489 = vmatprep.subr.mxu0 0.0
    %1490 = vmatpush1.msra.mxu0 0.0
    %1491 = vmatprep.subr.mxu0 0.0
    %1492 = vmatpush1.msra.mxu0 0.0
    %1493 = vmatprep.mubr.f32.mxu0 0.0
    %1494 = vmatmul.mubr.f32.gmra.mrb[0].mxu0 %v1357
    %v1495 = vpop.f32.mrb[0].mxu0
    %v1496 = vadd.f32 0.0, %v1495
    %v1497 = vpop.f32.mrb[0].mxu0
    %v1498 = vadd.f32 0.0, %v1497
    %1499 = vdwg.mxu0
    %v1500 = vadd.f32 %v1496, %v455
    %v1501 = vadd.f32 %v1498, %v459
    %v1502 = vtanh.pop %v1500
    %v1503 = vtanh.pop %v1501
    %v1504 = vmul.f32 %v1502, %v289
    %v1505 = vmul.f32 %v1503, %v290
    %v1506 = vadd.f32 %v1504, %v291
    %v1507 = vadd.f32 %v1505, %v292
    %v1508 = vsel %vm275, %v1507, %v1339
    %v1509 = vmul.f32 %v1506, %v1508
    %1510 = vrot.lane.b32.xlu0 %v1509, 64
    %v1511 = vpop.permute.xlu0 %1510
    %v1512 = vadd.f32 %v1509, %v1511
    %v1513 = vtanh.pop %v1512
    %v1514 = vmul.f32 %v1507, %v1513
    %v1515 = vadd.f32 %v204, %v1425
    %v1516 = vadd.f32 %v206, %v1427
    %v1517 = vtanh.pop %v1515
    %v1518 = vtanh.pop %v1516
    %v1519 = vmul.f32 %v1517, %v279
    %v1520 = vmul.f32 %v1518, %v280
    %v1521 = vadd.f32 %v1519, %v281
    %v1522 = vadd.f32 %v1520, %v282
    %v1523 = vsel %vm275, %v1354, %v1522
    %v1524 = vmul.f32 %v1521, %v1523
    %1525 = vrot.lane.b32.xlu0 %v1524, 64
    %v1526 = vpop.permute.xlu0 %1525
    %v1527 = vadd.f32 %v1524, %v1526
    %v1528 = vtanh.pop %v1527
    %v1529 = vmul.f32 %v1522, %v1528
    %v1530 = vsel %vm275, %v1529, %v1514
    %1531 = vmatprep.subr.mxu0 %v211
    %1532 = vmatpush1.msra.mxu0 %v210
    %1533 = vmatprep.subr.mxu0 %v215
    %1534 = vmatpush1.msra.mxu0 %v214
    %1535 = vmatprep.subr.mxu0 %v219
    %1536 = vmatpush1.msra.mxu0 %v218
    %1537 = vmatprep.subr.mxu0 %v223
    %1538 = vmatpush1.msra.mxu0 %v222
    %1539 = vmatprep.subr.mxu0 %v227
    %1540 = vmatpush1.msra.mxu0 %v226
    %1541 = vmatprep.subr.mxu0 %v231
    %1542 = vmatpush1.msra.mxu0 %v230
    %1543 = vmatprep.subr.mxu0 %v235
    %1544 = vmatpush1.msra.mxu0 %v234
    %1545 = vmatprep.subr.mxu0 %v239
    %1546 = vmatpush1.msra.mxu0 %v238
    %1547 = vmatprep.subr.mxu0 %v243
    %1548 = vmatpush1.msra.mxu0 %v242
    %1549 = vmatprep.subr.mxu0 %v247
    %1550 = vmatpush1.msra.mxu0 %v246
    %1551 = vmatprep.subr.mxu0 %v251
    %1552 = vmatpush1.msra.mxu0 %v250
    %1553 = vmatprep.subr.mxu0 %v255
    %1554 = vmatpush1.msra.mxu0 %v254
    %1555 = vmatprep.subr.mxu0 %v259
    %1556 = vmatpush1.msra.mxu0 %v258
    %1557 = vmatprep.subr.mxu0 %v263
    %1558 = vmatpush1.msra.mxu0 %v262
    %1559 = vmatprep.subr.mxu0 %v267
    %1560 = vmatpush1.msra.mxu0 %v266
    %1561 = vmatprep.subr.mxu0 %v271
    %1562 = vmatpush1.msra.mxu0 %v270
    %1563 = vmatprep.subr.mxu0 0.0
    %1564 = vmatpush1.msra.mxu0 0.0
    %1565 = vmatprep.subr.mxu0 0.0
    %1566 = vmatpush1.msra.mxu0 0.0
    %1567 = vmatprep.subr.mxu0 0.0
    %1568 = vmatpush1.msra.mxu0 0.0
    %1569 = vmatprep.subr.mxu0 0.0
    %1570 = vmatpush1.msra.mxu0 0.0
    %1571 = vmatprep.subr.mxu0 0.0
    %1572 = vmatpush1.msra.mxu0 0.0
    %1573 = vmatprep.subr.mxu0 0.0
    %1574 = vmatpush1.msra.mxu0 0.0
    %1575 = vmatprep.subr.mxu0 0.0
    %1576 = vmatpush1.msra.mxu0 0.0
    %1577 = vmatprep.subr.mxu0 0.0
    %1578 = vmatpush1.msra.mxu0 0.0
    %1579 = vmatprep.subr.mxu0 0.0
    %1580 = vmatpush1.msra.mxu0 0.0
    %1581 = vmatprep.subr.mxu0 0.0
    %1582 = vmatpush1.msra.mxu0 0.0
    %1583 = vmatprep.subr.mxu0 0.0
    %1584 = vmatpush1.msra.mxu0 0.0
    %1585 = vmatprep.subr.mxu0 0.0
    %1586 = vmatpush1.msra.mxu0 0.0
    %1587 = vmatprep.subr.mxu0 0.0
    %1588 = vmatpush1.msra.mxu0 0.0
    %1589 = vmatprep.subr.mxu0 0.0
    %1590 = vmatpush1.msra.mxu0 0.0
    %1591 = vmatprep.subr.mxu0 0.0
    %1592 = vmatpush1.msra.mxu0 0.0
    %1593 = vmatprep.subr.mxu0 0.0
    %1594 = vmatpush1.msra.mxu0 0.0
    %1595 = vmatprep.mubr.f32.mxu0 0.0
    %1596 = vmatmul.mubr.f32.gmra.mrb[0].mxu0 %v1530
    %v1597 = vpop.f32.mrb[0].mxu0
    %v1598 = vadd.f32 0.0, %v1597
    %v1599 = vpop.f32.mrb[0].mxu0
    %v1600 = vadd.f32 0.0, %v1599
    %1601 = vdwg.mxu0
    %v1602 = vadd.f32 %v1598, %v455
    %v1603 = vadd.f32 %v1600, %v459
    %v1604 = vtanh.pop %v1602
    %v1605 = vtanh.pop %v1603
    %v1606 = vmul.f32 %v1604, %v289
    %v1607 = vmul.f32 %v1605, %v290
    %v1608 = vadd.f32 %v1606, %v291
    %v1609 = vadd.f32 %v1607, %v292
    %v1610 = vsel %vm275, %v1609, %v1512
    %v1611 = vmul.f32 %v1608, %v1610
    %1612 = vrot.lane.b32.xlu0 %v1611, 64
    %v1613 = vpop.permute.xlu0 %1612
    %v1614 = vadd.f32 %v1611, %v1613
    %v1615 = vtanh.pop %v1614
    %v1616 = vmul.f32 %v1609, %v1615
    %v1617 = vld [vmem:[%s5] sm:$0x1]
    %v1619 = vlaneseq
    %v1620 = vshrl.u32 %v1619, 7
    %v1621 = vsub.s32 0, %v1620
    %v1622 = vrot.slane %v1617, %v1621
    %v1624 = vmul.f32 %v1616, %v1622
    %1625 = vadd.xlane.f32.xlu0 %v1624
    %v1626 = vpop.xlane.xlu0 %1625
    %v1627 = vld [vmem:[#allocation2] sm:$0x1]
    %v1629 = vlaneseq
    %v1630 = vshrl.u32 %v1629, 7
    %v1631 = vsub.s32 0, %v1630
    %v1632 = vrot.slane %v1627, %v1631
    %v1634 = vadd.f32 %v1626, %v1632
    %vm1635 = vcmask 7168
    %1636 = vst.msk [vmem:[%s7] sm:$0xff] %vm1635, %v1634
    // Predicated region
    $region34: #{rnn_model_forward.1} parent=1 // pred_check
      _
    $region35: #{rnn_model_forward.1} parent=1 // pred_check_branch
      %1638 = sbr.rel (0) target = $region37
    $region36: #{rnn_model_forward.1} parent=1 // pred_region
      _
    $region37: #{rnn_model_forward.1} parent=1 // pred_fallthru
      _
    // Predicated region
    $region38: #{rnn_model_forward.1} parent=1 // pred_check
      _
    $region39: #{rnn_model_forward.1} parent=1 // pred_check_branch
      %1640 = sbr.rel (0) target = $region41
    $region40: #{rnn_model_forward.1} parent=1 // pred_region
      _
    $region41: #{rnn_model_forward.1} parent=1 // pred_fallthru
      _
    %1641 = vsyncpa [#allocation4], 1

</llo_original>
